<compile_context>
chip_gen: v7x
topology: tpu7x:2x2x1
jax: 0.10.0
libtpu: 0.0.40
codegen_flags: <defaults>
</compile_context>

<pallas_src>
import functools

import jax
import jax.numpy as jnp
from jax.experimental import pallas as pl
from jax.experimental.pallas import tpu as pltpu

LANE = 128     # TPU lane width: every feature / node / category dim -> 128.
SUBLANE = 8    # f32 sublane tile: batch row count padded to a multiple of 8.


def _rup(x, m):
    return ((x + m - 1) // m) * m


# ----------------------------------------------------------------------------
# One fused Pallas kernel for the whole forward pass.
# Arg order: (*in_refs, *out_refs).  No scratch needed: everything fits vregs.
# ----------------------------------------------------------------------------
def fused_forward_kernel(*refs, inv_temp, cat_dim, n_enc, enc_acts, tail_acts):
    n_tail = len(tail_acts)
    n_wb = n_enc + 2 + n_tail                      # (w, b) pairs
    n_in = 4 + 2 * n_wb
    a_ref, x_ref, s_ref, g_ref = refs[:4]
    wb = refs[4:n_in]
    out_ref, h0_ref, z_ref = refs[n_in:n_in + 3]

    # ---- encoder: GCN layers.  X@W is computed exactly once per layer.
    a = a_ref[...]
    feat = x_ref[...]
    wi = 0
    for li in range(n_enc):
        w = wb[2 * wi][...]
        b = wb[2 * wi + 1][...]
        wi += 1
        xw = jnp.dot(feat, w, preferred_element_type=jnp.float32)
        y = jnp.dot(a, xw, preferred_element_type=jnp.float32) + b
        feat = jnp.maximum(y, 0.0) if enc_acts[li] == "relu" else y

    # ---- node-pair gather+add as ONE MXU matmul with the precomputed
    #      two-hot selection matrix S[b_pad, n_pad]:  hadd = S @ H.
    hadd = jnp.dot(s_ref[...], feat, preferred_element_type=jnp.float32)

    # ---- VI_relearn: logits -> gumbel-softmax -> relearned representation H0.
    wq = wb[2 * wi][...]; bq = wb[2 * wi + 1][...]; wi += 1
    wz = wb[2 * wi][...]; bz = wb[2 * wi + 1][...]; wi += 1
    logits = jnp.dot(hadd, wq, preferred_element_type=jnp.float32) + bq
    y = (logits + g_ref[...]) * inv_temp
    lane = jax.lax.broadcasted_iota(jnp.int32, y.shape, 1)
    y = jnp.where(lane < cat_dim, y, -1e30)        # mask padded categories
    y = y - jnp.max(y, axis=-1, keepdims=True)
    e = jnp.exp(y)
    z = e / jnp.sum(e, axis=-1, keepdims=True)     # pad lanes exactly 0
    h0 = jnp.dot(z, wz, preferred_element_type=jnp.float32) + bz
    h0 = jnp.maximum(h0, 0.0)

    # ---- decoder / classifier tail (all intermediates stay in vregs).
    t = h0
    for li in range(n_tail):
        w = wb[2 * wi][...]; b = wb[2 * wi + 1][...]; wi += 1
        t = jnp.dot(t, w, preferred_element_type=jnp.float32) + b
        if tail_acts[li] == "relu":
            t = jnp.maximum(t, 0.0)

    out_ref[...] = t
    h0_ref[...] = h0
    z_ref[...] = z


# ----------------------------------------------------------------------------
# pallas_call wrapper
# ----------------------------------------------------------------------------
def fused_forward(pparams, a_pad, x_pad, s_pad, g_pad, *,
                  domain, mode, temp, cat_dim):
    if domain == "source":
        enc = [("pe_s_w", "pe_s_b", "relu"), ("se_w", "se_b", None)]
    else:
        enc = [("se_w", "se_b", None)]
    if mode == "recon":
        tail = [("sd_w", "sd_b", "relu")]
        if domain == "source":
            tail += [("pd_s_w1", "pd_s_b1", "relu"),
                     ("pd_s_w2", "pd_s_b2", None)]
    elif mode == "link":
        tail = [("cls_w1", "cls_b1", "relu"), ("cls_w2", "cls_b2", None)]
    else:
        raise ValueError(f"unknown mode {mode!r}")

    layers = enc + [("vi_wq", "vi_bq", None), ("vi_wz", "vi_bz", None)] + tail
    wb = []
    for wname, bname, _ in layers:
        wb.append(pparams[wname])
        wb.append(pparams[bname])

    b_pad, cat_pad = g_pad.shape
    h2_pad = pparams["vi_wz"].shape[1]
    out_pad = wb[-2].shape[1]           # last weight's (padded) out_features

    kernel = functools.partial(
        fused_forward_kernel,
        inv_temp=float(1.0 / temp), cat_dim=cat_dim,
        n_enc=len(enc),
        enc_acts=tuple(item[2] for item in enc),
        tail_acts=tuple(item[2] for item in tail))

    full = lambda i: (0, 0)             # grid=(1,), full-array blocks
    return pl.pallas_call(
        kernel,
        grid=(1,),
        in_specs=[pl.BlockSpec(a_pad.shape, full),
                  pl.BlockSpec(x_pad.shape, full),
                  pl.BlockSpec(s_pad.shape, full),
                  pl.BlockSpec(g_pad.shape, full)]
                 + [pl.BlockSpec(w.shape, full) for w in wb],
        out_specs=[pl.BlockSpec((b_pad, out_pad), full),
                   pl.BlockSpec((b_pad, h2_pad), full),
                   pl.BlockSpec((b_pad, cat_pad), full)],
        out_shape=(jax.ShapeDtypeStruct((b_pad, out_pad), jnp.float32),
                   jax.ShapeDtypeStruct((b_pad, h2_pad), jnp.float32),
                   jax.ShapeDtypeStruct((b_pad, cat_pad), jnp.float32)),
        compiler_params=pltpu.CompilerParams(
            dimension_semantics=("arbitrary",)),
    )(a_pad, x_pad, s_pad, g_pad, *wb)


# ----------------------------------------------------------------------------
# Glue (plain JAX): adjacency normalization, parameter init / lane padding
# ----------------------------------------------------------------------------
def normalized_adjacency(edge_index, num_nodes):
    src, dst = edge_index[0], edge_index[1]
    a = jnp.zeros((num_nodes, num_nodes), jnp.float32).at[src, dst].set(1.0)
    a = jnp.where((a + a.T) > 0, 1.0, 0.0)
    a = a + jnp.eye(num_nodes, dtype=jnp.float32)       # self loops
    d_inv_sqrt = 1.0 / jnp.sqrt(jnp.sum(a, axis=1))
    return a * d_inv_sqrt[:, None] * d_inv_sqrt[None, :]


def init_params(key, in_dim, hidden_dim, categorical_dim):
    h0, h1, h2, h3, h4 = hidden_dim
    shapes = {
        "pe_s_w": (in_dim, h0), "pe_s_b": (1, h0),        # private_encoder_source
        "se_w": (h0, h1), "se_b": (1, h1),                # shared_encoder
        "vi_wq": (h1, categorical_dim), "vi_bq": (1, categorical_dim),
        "vi_wz": (categorical_dim, h2), "vi_bz": (1, h2),
        "sd_w": (h2, h3), "sd_b": (1, h3),                # shared_decoder
        "pd_s_w1": (h3, h4), "pd_s_b1": (1, h4),          # private_decoder_source
        "pd_s_w2": (h4, in_dim), "pd_s_b2": (1, in_dim),
        "cls_w1": (h2, h2 // 2), "cls_b1": (1, h2 // 2),  # relation_classifier
        "cls_w2": (h2 // 2, categorical_dim), "cls_b2": (1, categorical_dim),
    }
    params = {}
    for name, shp in sorted(shapes.items()):
        key, sub = jax.random.split(key)
        params[name] = 0.1 * jax.random.normal(sub, shp, jnp.float32)
    return params


def pad_params(params):
    """Zero-pad every weight / bias to lane-dense (multiple-of-128) shapes.

    Done ONCE; zero padding keeps all real output lanes numerically identical
    (padded softmax lanes are masked inside the kernel)."""
    padded, true_shapes = {}, {}
    for name, v in params.items():
        r, c = v.shape
        rp = r if r == 1 else _rup(r, LANE)
        cp = _rup(c, LANE)
        padded[name] = jnp.zeros((rp, cp), jnp.float32).at[:r, :c].set(v)
        true_shapes[name] = (r, c)
    return padded, true_shapes


def mrvaeda_forward(pparams, true_shapes, x, a_norm, node_pair, gumbel,
                    domain="source", mode="recon", rate=None, temp=0.5):
    """Mirrors MRVAEDA.forward(x, edge_index, node_pair, domain, mode, rate).

    `rate` is accepted but unused, exactly as in the original module."""
    del rate
    node_num, in_dim = x.shape
    batch = node_pair.shape[0]
    cat_dim = true_shapes["vi_wq"][1]
    h2_dim = true_shapes["vi_wz"][1]

    # Lane-dense padding: node count -> 128 lanes so A / S / H are all
    # unmasked matmul operands; padded node rows/cols are zero so results on
    # real rows are untouched.
    n_pad = _rup(node_num, LANE)
    in_pad = _rup(in_dim, LANE)
    b_pad = _rup(batch, SUBLANE)
    cat_pad = _rup(cat_dim, LANE)

    x_pad = jnp.zeros((n_pad, in_pad), jnp.float32).at[:node_num, :in_dim].set(x)
    a_pad = jnp.zeros((n_pad, n_pad), jnp.float32).at[:node_num, :node_num].set(a_norm)
    g_pad = jnp.zeros((b_pad, cat_pad), jnp.float32).at[:batch, :cat_dim].set(gumbel)

    # Two-hot selection matrix: hadd = S @ H  ==  H[pair0] + H[pair1].
    s = (jax.nn.one_hot(node_pair[:, 0], node_num, dtype=jnp.float32) +
         jax.nn.one_hot(node_pair[:, 1], node_num, dtype=jnp.float32))
    s_pad = jnp.zeros((b_pad, n_pad), jnp.float32).at[:batch, :node_num].set(s)

    out, h0, z = fused_forward(pparams, a_pad, x_pad, s_pad, g_pad,
                               domain=domain, mode=mode, temp=temp,
                               cat_dim=cat_dim)

    if mode == "recon":
        last = "pd_s_w2" if domain == "source" else "sd_w"
    else:
        last = "cls_w2"
    out_dim = true_shapes[last][1]
    return out[:batch, :out_dim], h0[:batch, :h2_dim], z[:batch, :cat_dim]


# ----------------------------------------------------------------------------
# Pure-JAX reference for correctness checking
# ----------------------------------------------------------------------------
def reference_forward(params, x, a_norm, node_pair, gumbel,
                      domain="source", mode="recon", temp=0.5):
    if domain == "source":
        x = jax.nn.relu(a_norm @ x @ params["pe_s_w"] + params["pe_s_b"])
    h = a_norm @ x @ params["se_w"] + params["se_b"]
    hadd = h[node_pair[:, 0]] + h[node_pair[:, 1]]
    logits = hadd @ params["vi_wq"] + params["vi_bq"]
    z = jax.nn.softmax((logits + gumbel) / temp, axis=-1)
    H0 = jax.nn.relu(z @ params["vi_wz"] + params["vi_bz"])
    if mode == "recon":
        out = jax.nn.relu(H0 @ params["sd_w"] + params["sd_b"])
        if domain == "source":
            d = jax.nn.relu(out @ params["pd_s_w1"] + params["pd_s_b1"])
            out = d @ params["pd_s_w2"] + params["pd_s_b2"]
    else:
        c = jax.nn.relu(H0 @ params["cls_w1"] + params["cls_b1"])
        out = c @ params["cls_w2"] + params["cls_b2"]
    return out, H0, z


if __name__ == "__main__":
    in_dim = 32
    hidden_dim = (32, 32, 16, 32, 32)
    categorical_dim = 4
    node_num = 16
    num_edges = 40
    batch = 8

    key = jax.random.PRNGKey(0)
    k_param, k_x, k_edge, k_pair, k_gumbel = jax.random.split(key, 5)

    params = init_params(k_param, in_dim, hidden_dim, categorical_dim)
    pparams, true_shapes = pad_params(params)   # lane-dense copies, made once

    x = jax.random.normal(k_x, (node_num, in_dim), jnp.float32)
    edge_index = jax.random.randint(k_edge, (2, num_edges), 0, node_num, jnp.int32)
    node_pair = jax.random.randint(k_pair, (batch, 2), 0, node_num, jnp.int32)
    # Deterministic Gumbel noise (fixed key) used by the gumbel-softmax in VI.
    u = jax.random.uniform(k_gumbel, (batch, categorical_dim), jnp.float32,
                           minval=1e-6, maxval=1.0 - 1e-6)
    gumbel = -jnp.log(-jnp.log(u))

    # Adjacency normalization is static per graph: computed once, reused.
    a_norm = normalized_adjacency(edge_index, node_num)

    for mode in ("recon", "link"):
        out, H0, z = mrvaeda_forward(pparams, true_shapes, x, a_norm,
                                     node_pair, gumbel, domain="source",
                                     mode=mode, rate=None)
        jax.block_until_ready((out, H0, z))
        out_r, H0_r, z_r = reference_forward(params, x, a_norm, node_pair,
                                             gumbel, domain="source", mode=mode)
        assert jnp.allclose(out, out_r, atol=1e-4, rtol=1e-4), mode
        assert jnp.allclose(H0, H0_r, atol=1e-4, rtol=1e-4), mode
        assert jnp.allclose(z, z_r, atol=1e-4, rtol=1e-4), mode

    print("KERNEL_OK")
</pallas_src>

<mosaic_0001>
module attributes {stable_mosaic.version = 11 : i64} {
  func.func @fused_forward_kernel(%arg0: i32, %arg1: memref<128x128xf32, #tpu.memory_space<vmem>>, %arg2: memref<128x128xf32, #tpu.memory_space<vmem>>, %arg3: memref<8x128xf32, #tpu.memory_space<vmem>>, %arg4: memref<8x128xf32, #tpu.memory_space<vmem>>, %arg5: memref<128x128xf32, #tpu.memory_space<vmem>>, %arg6: memref<1x128xf32, #tpu.memory_space<vmem>>, %arg7: memref<128x128xf32, #tpu.memory_space<vmem>>, %arg8: memref<1x128xf32, #tpu.memory_space<vmem>>, %arg9: memref<128x128xf32, #tpu.memory_space<vmem>>, %arg10: memref<1x128xf32, #tpu.memory_space<vmem>>, %arg11: memref<128x128xf32, #tpu.memory_space<vmem>>, %arg12: memref<1x128xf32, #tpu.memory_space<vmem>>, %arg13: memref<128x128xf32, #tpu.memory_space<vmem>>, %arg14: memref<1x128xf32, #tpu.memory_space<vmem>>, %arg15: memref<128x128xf32, #tpu.memory_space<vmem>>, %arg16: memref<1x128xf32, #tpu.memory_space<vmem>>, %arg17: memref<128x128xf32, #tpu.memory_space<vmem>>, %arg18: memref<1x128xf32, #tpu.memory_space<vmem>>, %arg19: memref<8x128xf32, #tpu.memory_space<vmem>>, %arg20: memref<8x128xf32, #tpu.memory_space<vmem>>, %arg21: memref<8x128xf32, #tpu.memory_space<vmem>>) attributes {dimension_semantics = [#tpu.dimension_semantics<arbitrary>], iteration_bounds = array<i64: 1>, scalar_prefetch = 0 : i64, scratch_operands = 0 : i64, tpu.core_type = #tpu.core_type<tc>, window_params = [{pipeline_mode = #tpu.pipeline_mode<synchronous>, transform_indices = @transform_0, window_bounds = array<i64: 128, 128>}, {pipeline_mode = #tpu.pipeline_mode<synchronous>, transform_indices = @transform_1, window_bounds = array<i64: 128, 128>}, {pipeline_mode = #tpu.pipeline_mode<synchronous>, transform_indices = @transform_2, window_bounds = array<i64: 8, 128>}, {pipeline_mode = #tpu.pipeline_mode<synchronous>, transform_indices = @transform_3, window_bounds = array<i64: 8, 128>}, {pipeline_mode = #tpu.pipeline_mode<synchronous>, transform_indices = @transform_4, window_bounds = array<i64: 128, 128>}, {pipeline_mode = #tpu.pipeline_mode<synchronous>, transform_indices = @transform_5, window_bounds = array<i64: 1, 128>}, {pipeline_mode = #tpu.pipeline_mode<synchronous>, transform_indices = @transform_6, window_bounds = array<i64: 128, 128>}, {pipeline_mode = #tpu.pipeline_mode<synchronous>, transform_indices = @transform_7, window_bounds = array<i64: 1, 128>}, {pipeline_mode = #tpu.pipeline_mode<synchronous>, transform_indices = @transform_8, window_bounds = array<i64: 128, 128>}, {pipeline_mode = #tpu.pipeline_mode<synchronous>, transform_indices = @transform_9, window_bounds = array<i64: 1, 128>}, {pipeline_mode = #tpu.pipeline_mode<synchronous>, transform_indices = @transform_10, window_bounds = array<i64: 128, 128>}, {pipeline_mode = #tpu.pipeline_mode<synchronous>, transform_indices = @transform_11, window_bounds = array<i64: 1, 128>}, {pipeline_mode = #tpu.pipeline_mode<synchronous>, transform_indices = @transform_12, window_bounds = array<i64: 128, 128>}, {pipeline_mode = #tpu.pipeline_mode<synchronous>, transform_indices = @transform_13, window_bounds = array<i64: 1, 128>}, {pipeline_mode = #tpu.pipeline_mode<synchronous>, transform_indices = @transform_14, window_bounds = array<i64: 128, 128>}, {pipeline_mode = #tpu.pipeline_mode<synchronous>, transform_indices = @transform_15, window_bounds = array<i64: 1, 128>}, {pipeline_mode = #tpu.pipeline_mode<synchronous>, transform_indices = @transform_16, window_bounds = array<i64: 128, 128>}, {pipeline_mode = #tpu.pipeline_mode<synchronous>, transform_indices = @transform_17, window_bounds = array<i64: 1, 128>}, {pipeline_mode = #tpu.pipeline_mode<synchronous>, transform_indices = @transform_18, window_bounds = array<i64: 8, 128>}, {pipeline_mode = #tpu.pipeline_mode<synchronous>, transform_indices = @transform_19, window_bounds = array<i64: 8, 128>}, {pipeline_mode = #tpu.pipeline_mode<synchronous>, transform_indices = @transform_20, window_bounds = array<i64: 8, 128>}]} {
    %c0 = arith.constant 0 : index
    %c0_0 = arith.constant 0 : index
    %0 = vector.load %arg1[%c0, %c0_0] : memref<128x128xf32, #tpu.memory_space<vmem>>, vector<128x128xf32>
    %c0_1 = arith.constant 0 : index
    %c0_2 = arith.constant 0 : index
    %1 = vector.load %arg2[%c0_1, %c0_2] : memref<128x128xf32, #tpu.memory_space<vmem>>, vector<128x128xf32>
    %c0_3 = arith.constant 0 : index
    %c0_4 = arith.constant 0 : index
    %2 = vector.load %arg5[%c0_3, %c0_4] : memref<128x128xf32, #tpu.memory_space<vmem>>, vector<128x128xf32>
    %c0_5 = arith.constant 0 : index
    %c0_6 = arith.constant 0 : index
    %3 = vector.load %arg6[%c0_5, %c0_6] : memref<1x128xf32, #tpu.memory_space<vmem>>, vector<1x128xf32>
    %cst = arith.constant dense<0.000000e+00> : vector<128x128xf32>
    %4 = tpu.matmul %1, %2, %cst {dimension_numbers = #tpu.dot_dimension_numbers<[1], [0], [0], [1], [0, 0, 1, 1], [], []>} : vector<128x128xf32>, vector<128x128xf32>, vector<128x128xf32> -> vector<128x128xf32>
    %cst_7 = arith.constant dense<0.000000e+00> : vector<128x128xf32>
    %5 = tpu.matmul %0, %4, %cst_7 {dimension_numbers = #tpu.dot_dimension_numbers<[1], [0], [0], [1], [0, 0, 1, 1], [], []>} : vector<128x128xf32>, vector<128x128xf32>, vector<128x128xf32> -> vector<128x128xf32>
    %6 = vector.broadcast %3 : vector<1x128xf32> to vector<128x128xf32>
    %7 = arith.addf %5, %6 : vector<128x128xf32>
    %cst_8 = arith.constant 0.000000e+00 : f32
    %8 = vector.broadcast %cst_8 : f32 to vector<128x128xf32>
    %9 = arith.maximumf %7, %8 : vector<128x128xf32>
    %c0_9 = arith.constant 0 : index
    %c0_10 = arith.constant 0 : index
    %10 = vector.load %arg7[%c0_9, %c0_10] : memref<128x128xf32, #tpu.memory_space<vmem>>, vector<128x128xf32>
    %c0_11 = arith.constant 0 : index
    %c0_12 = arith.constant 0 : index
    %11 = vector.load %arg8[%c0_11, %c0_12] : memref<1x128xf32, #tpu.memory_space<vmem>>, vector<1x128xf32>
    %cst_13 = arith.constant dense<0.000000e+00> : vector<128x128xf32>
    %12 = tpu.matmul %9, %10, %cst_13 {dimension_numbers = #tpu.dot_dimension_numbers<[1], [0], [0], [1], [0, 0, 1, 1], [], []>} : vector<128x128xf32>, vector<128x128xf32>, vector<128x128xf32> -> vector<128x128xf32>
    %cst_14 = arith.constant dense<0.000000e+00> : vector<128x128xf32>
    %13 = tpu.matmul %0, %12, %cst_14 {dimension_numbers = #tpu.dot_dimension_numbers<[1], [0], [0], [1], [0, 0, 1, 1], [], []>} : vector<128x128xf32>, vector<128x128xf32>, vector<128x128xf32> -> vector<128x128xf32>
    %14 = vector.broadcast %11 : vector<1x128xf32> to vector<128x128xf32>
    %15 = arith.addf %13, %14 : vector<128x128xf32>
    %c0_15 = arith.constant 0 : index
    %c0_16 = arith.constant 0 : index
    %16 = vector.load %arg3[%c0_15, %c0_16] : memref<8x128xf32, #tpu.memory_space<vmem>>, vector<8x128xf32>
    %cst_17 = arith.constant dense<0.000000e+00> : vector<8x128xf32>
    %17 = tpu.matmul %16, %15, %cst_17 {dimension_numbers = #tpu.dot_dimension_numbers<[1], [0], [0], [1], [0, 0, 1, 1], [], []>} : vector<8x128xf32>, vector<128x128xf32>, vector<8x128xf32> -> vector<8x128xf32>
    %c0_18 = arith.constant 0 : index
    %c0_19 = arith.constant 0 : index
    %18 = vector.load %arg9[%c0_18, %c0_19] : memref<128x128xf32, #tpu.memory_space<vmem>>, vector<128x128xf32>
    %c0_20 = arith.constant 0 : index
    %c0_21 = arith.constant 0 : index
    %19 = vector.load %arg10[%c0_20, %c0_21] : memref<1x128xf32, #tpu.memory_space<vmem>>, vector<1x128xf32>
    %c0_22 = arith.constant 0 : index
    %c0_23 = arith.constant 0 : index
    %20 = vector.load %arg11[%c0_22, %c0_23] : memref<128x128xf32, #tpu.memory_space<vmem>>, vector<128x128xf32>
    %c0_24 = arith.constant 0 : index
    %c0_25 = arith.constant 0 : index
    %21 = vector.load %arg12[%c0_24, %c0_25] : memref<1x128xf32, #tpu.memory_space<vmem>>, vector<1x128xf32>
    %cst_26 = arith.constant dense<0.000000e+00> : vector<8x128xf32>
    %22 = tpu.matmul %17, %18, %cst_26 {dimension_numbers = #tpu.dot_dimension_numbers<[1], [0], [0], [1], [0, 0, 1, 1], [], []>} : vector<8x128xf32>, vector<128x128xf32>, vector<8x128xf32> -> vector<8x128xf32>
    %23 = vector.broadcast %19 : vector<1x128xf32> to vector<8x128xf32>
    %24 = arith.addf %22, %23 : vector<8x128xf32>
    %c0_27 = arith.constant 0 : index
    %c0_28 = arith.constant 0 : index
    %25 = vector.load %arg4[%c0_27, %c0_28] : memref<8x128xf32, #tpu.memory_space<vmem>>, vector<8x128xf32>
    %26 = arith.addf %24, %25 : vector<8x128xf32>
    %cst_29 = arith.constant 2.000000e+00 : f32
    %27 = vector.broadcast %cst_29 : f32 to vector<8x128xf32>
    %28 = arith.mulf %26, %27 : vector<8x128xf32>
    %29 = tpu.iota {dimensions = array<i32: 1>} : vector<8x128xi32>
    %c4_i32 = arith.constant 4 : i32
    %30 = vector.broadcast %c4_i32 : i32 to vector<8x128xi32>
    %31 = arith.cmpi slt, %29, %30 : vector<8x128xi32>
    %cst_30 = arith.constant -1.000000e+30 : f32
    %32 = vector.broadcast %cst_30 : f32 to vector<8x128xf32>
    %33 = arith.select %31, %28, %32 : vector<8x128xi1>, vector<8x128xf32>
    %cst_31 = arith.constant dense<0xFF800000> : vector<8xf32>
    %34 = vector.multi_reduction <maximumf>, %33, %cst_31 [1] : vector<8x128xf32> to vector<8xf32>
    %35 = vector.shape_cast %34 : vector<8xf32> to vector<8x1xf32>
    %36 = vector.broadcast %35 : vector<8x1xf32> to vector<8x128xf32>
    %37 = arith.subf %33, %36 : vector<8x128xf32>
    %38 = math.exp %37 : vector<8x128xf32>
    %cst_32 = arith.constant dense<0.000000e+00> : vector<8xf32>
    %39 = vector.multi_reduction <add>, %38, %cst_32 [1] : vector<8x128xf32> to vector<8xf32>
    %40 = vector.shape_cast %39 : vector<8xf32> to vector<8x1xf32>
    %41 = vector.broadcast %40 : vector<8x1xf32> to vector<8x128xf32>
    %42 = arith.divf %38, %41 : vector<8x128xf32>
    %cst_33 = arith.constant dense<0.000000e+00> : vector<8x128xf32>
    %43 = tpu.matmul %42, %20, %cst_33 {dimension_numbers = #tpu.dot_dimension_numbers<[1], [0], [0], [1], [0, 0, 1, 1], [], []>} : vector<8x128xf32>, vector<128x128xf32>, vector<8x128xf32> -> vector<8x128xf32>
    %44 = vector.broadcast %21 : vector<1x128xf32> to vector<8x128xf32>
    %45 = arith.addf %43, %44 : vector<8x128xf32>
    %cst_34 = arith.constant 0.000000e+00 : f32
    %46 = vector.broadcast %cst_34 : f32 to vector<8x128xf32>
    %47 = arith.maximumf %45, %46 : vector<8x128xf32>
    %c0_35 = arith.constant 0 : index
    %c0_36 = arith.constant 0 : index
    %48 = vector.load %arg13[%c0_35, %c0_36] : memref<128x128xf32, #tpu.memory_space<vmem>>, vector<128x128xf32>
    %c0_37 = arith.constant 0 : index
    %c0_38 = arith.constant 0 : index
    %49 = vector.load %arg14[%c0_37, %c0_38] : memref<1x128xf32, #tpu.memory_space<vmem>>, vector<1x128xf32>
    %cst_39 = arith.constant dense<0.000000e+00> : vector<8x128xf32>
    %50 = tpu.matmul %47, %48, %cst_39 {dimension_numbers = #tpu.dot_dimension_numbers<[1], [0], [0], [1], [0, 0, 1, 1], [], []>} : vector<8x128xf32>, vector<128x128xf32>, vector<8x128xf32> -> vector<8x128xf32>
    %51 = vector.broadcast %49 : vector<1x128xf32> to vector<8x128xf32>
    %52 = arith.addf %50, %51 : vector<8x128xf32>
    %cst_40 = arith.constant 0.000000e+00 : f32
    %53 = vector.broadcast %cst_40 : f32 to vector<8x128xf32>
    %54 = arith.maximumf %52, %53 : vector<8x128xf32>
    %c0_41 = arith.constant 0 : index
    %c0_42 = arith.constant 0 : index
    %55 = vector.load %arg15[%c0_41, %c0_42] : memref<128x128xf32, #tpu.memory_space<vmem>>, vector<128x128xf32>
    %c0_43 = arith.constant 0 : index
    %c0_44 = arith.constant 0 : index
    %56 = vector.load %arg16[%c0_43, %c0_44] : memref<1x128xf32, #tpu.memory_space<vmem>>, vector<1x128xf32>
    %cst_45 = arith.constant dense<0.000000e+00> : vector<8x128xf32>
    %57 = tpu.matmul %54, %55, %cst_45 {dimension_numbers = #tpu.dot_dimension_numbers<[1], [0], [0], [1], [0, 0, 1, 1], [], []>} : vector<8x128xf32>, vector<128x128xf32>, vector<8x128xf32> -> vector<8x128xf32>
    %58 = vector.broadcast %56 : vector<1x128xf32> to vector<8x128xf32>
    %59 = arith.addf %57, %58 : vector<8x128xf32>
    %cst_46 = arith.constant 0.000000e+00 : f32
    %60 = vector.broadcast %cst_46 : f32 to vector<8x128xf32>
    %61 = arith.maximumf %59, %60 : vector<8x128xf32>
    %c0_47 = arith.constant 0 : index
    %c0_48 = arith.constant 0 : index
    %62 = vector.load %arg17[%c0_47, %c0_48] : memref<128x128xf32, #tpu.memory_space<vmem>>, vector<128x128xf32>
    %c0_49 = arith.constant 0 : index
    %c0_50 = arith.constant 0 : index
    %63 = vector.load %arg18[%c0_49, %c0_50] : memref<1x128xf32, #tpu.memory_space<vmem>>, vector<1x128xf32>
    %cst_51 = arith.constant dense<0.000000e+00> : vector<8x128xf32>
    %64 = tpu.matmul %61, %62, %cst_51 {dimension_numbers = #tpu.dot_dimension_numbers<[1], [0], [0], [1], [0, 0, 1, 1], [], []>} : vector<8x128xf32>, vector<128x128xf32>, vector<8x128xf32> -> vector<8x128xf32>
    %65 = vector.broadcast %63 : vector<1x128xf32> to vector<8x128xf32>
    %66 = arith.addf %64, %65 : vector<8x128xf32>
    %c0_52 = arith.constant 0 : index
    %c0_53 = arith.constant 0 : index
    %67 = vector.load %arg19[%c0_52, %c0_53] : memref<8x128xf32, #tpu.memory_space<vmem>>, vector<8x128xf32>
    tpu.vector_store %arg19[%c0_52, %c0_53], %66 {strides = array<i32>} : memref<8x128xf32, #tpu.memory_space<vmem>>, vector<8x128xf32>,
    %c0_54 = arith.constant 0 : index
    %c0_55 = arith.constant 0 : index
    %68 = vector.load %arg20[%c0_54, %c0_55] : memref<8x128xf32, #tpu.memory_space<vmem>>, vector<8x128xf32>
    tpu.vector_store %arg20[%c0_54, %c0_55], %47 {strides = array<i32>} : memref<8x128xf32, #tpu.memory_space<vmem>>, vector<8x128xf32>,
    %c0_56 = arith.constant 0 : index
    %c0_57 = arith.constant 0 : index
    %69 = vector.load %arg21[%c0_56, %c0_57] : memref<8x128xf32, #tpu.memory_space<vmem>>, vector<8x128xf32>
    tpu.vector_store %arg21[%c0_56, %c0_57], %42 {strides = array<i32>} : memref<8x128xf32, #tpu.memory_space<vmem>>, vector<8x128xf32>,
    return
  }
  func.func @transform_0(%arg0: i32) -> (i32, i32) {
    %c0_i32 = arith.constant 0 : i32
    %c0_i32_0 = arith.constant 0 : i32
    %c0_i32_1 = arith.constant 0 : i32
    return %c0_i32, %c0_i32_0 : i32, i32
  }
  func.func @transform_1(%arg0: i32) -> (i32, i32) {
    %c0_i32 = arith.constant 0 : i32
    %c0_i32_0 = arith.constant 0 : i32
    %c0_i32_1 = arith.constant 0 : i32
    return %c0_i32, %c0_i32_0 : i32, i32
  }
  func.func @transform_2(%arg0: i32) -> (i32, i32) {
    %c0_i32 = arith.constant 0 : i32
    %c0_i32_0 = arith.constant 0 : i32
    %c0_i32_1 = arith.constant 0 : i32
    return %c0_i32, %c0_i32_0 : i32, i32
  }
  func.func @transform_3(%arg0: i32) -> (i32, i32) {
    %c0_i32 = arith.constant 0 : i32
    %c0_i32_0 = arith.constant 0 : i32
    %c0_i32_1 = arith.constant 0 : i32
    return %c0_i32, %c0_i32_0 : i32, i32
  }
  func.func @transform_4(%arg0: i32) -> (i32, i32) {
    %c0_i32 = arith.constant 0 : i32
    %c0_i32_0 = arith.constant 0 : i32
    %c0_i32_1 = arith.constant 0 : i32
    return %c0_i32, %c0_i32_0 : i32, i32
  }
  func.func @transform_5(%arg0: i32) -> (i32, i32) {
    %c0_i32 = arith.constant 0 : i32
    %c0_i32_0 = arith.constant 0 : i32
    %c0_i32_1 = arith.constant 0 : i32
    return %c0_i32, %c0_i32_0 : i32, i32
  }
  func.func @transform_6(%arg0: i32) -> (i32, i32) {
    %c0_i32 = arith.constant 0 : i32
    %c0_i32_0 = arith.constant 0 : i32
    %c0_i32_1 = arith.constant 0 : i32
    return %c0_i32, %c0_i32_0 : i32, i32
  }
  func.func @transform_7(%arg0: i32) -> (i32, i32) {
    %c0_i32 = arith.constant 0 : i32
    %c0_i32_0 = arith.constant 0 : i32
    %c0_i32_1 = arith.constant 0 : i32
    return %c0_i32, %c0_i32_0 : i32, i32
  }
  func.func @transform_8(%arg0: i32) -> (i32, i32) {
    %c0_i32 = arith.constant 0 : i32
    %c0_i32_0 = arith.constant 0 : i32
    %c0_i32_1 = arith.constant 0 : i32
    return %c0_i32, %c0_i32_0 : i32, i32
  }
  func.func @transform_9(%arg0: i32) -> (i32, i32) {
    %c0_i32 = arith.constant 0 : i32
    %c0_i32_0 = arith.constant 0 : i32
    %c0_i32_1 = arith.constant 0 : i32
    return %c0_i32, %c0_i32_0 : i32, i32
  }
  func.func @transform_10(%arg0: i32) -> (i32, i32) {
    %c0_i32 = arith.constant 0 : i32
    %c0_i32_0 = arith.constant 0 : i32
    %c0_i32_1 = arith.constant 0 : i32
    return %c0_i32, %c0_i32_0 : i32, i32
  }
  func.func @transform_11(%arg0: i32) -> (i32, i32) {
    %c0_i32 = arith.constant 0 : i32
    %c0_i32_0 = arith.constant 0 : i32
    %c0_i32_1 = arith.constant 0 : i32
    return %c0_i32, %c0_i32_0 : i32, i32
  }
  func.func @transform_12(%arg0: i32) -> (i32, i32) {
    %c0_i32 = arith.constant 0 : i32
    %c0_i32_0 = arith.constant 0 : i32
    %c0_i32_1 = arith.constant 0 : i32
    return %c0_i32, %c0_i32_0 : i32, i32
  }
  func.func @transform_13(%arg0: i32) -> (i32, i32) {
    %c0_i32 = arith.constant 0 : i32
    %c0_i32_0 = arith.constant 0 : i32
    %c0_i32_1 = arith.constant 0 : i32
    return %c0_i32, %c0_i32_0 : i32, i32
  }
  func.func @transform_14(%arg0: i32) -> (i32, i32) {
    %c0_i32 = arith.constant 0 : i32
    %c0_i32_0 = arith.constant 0 : i32
    %c0_i32_1 = arith.constant 0 : i32
    return %c0_i32, %c0_i32_0 : i32, i32
  }
  func.func @transform_15(%arg0: i32) -> (i32, i32) {
    %c0_i32 = arith.constant 0 : i32
    %c0_i32_0 = arith.constant 0 : i32
    %c0_i32_1 = arith.constant 0 : i32
    return %c0_i32, %c0_i32_0 : i32, i32
  }
  func.func @transform_16(%arg0: i32) -> (i32, i32) {
    %c0_i32 = arith.constant 0 : i32
    %c0_i32_0 = arith.constant 0 : i32
    %c0_i32_1 = arith.constant 0 : i32
    return %c0_i32, %c0_i32_0 : i32, i32
  }
  func.func @transform_17(%arg0: i32) -> (i32, i32) {
    %c0_i32 = arith.constant 0 : i32
    %c0_i32_0 = arith.constant 0 : i32
    %c0_i32_1 = arith.constant 0 : i32
    return %c0_i32, %c0_i32_0 : i32, i32
  }
  func.func @transform_18(%arg0: i32) -> (i32, i32) {
    %c0_i32 = arith.constant 0 : i32
    %c0_i32_0 = arith.constant 0 : i32
    %c0_i32_1 = arith.constant 0 : i32
    return %c0_i32, %c0_i32_0 : i32, i32
  }
  func.func @transform_19(%arg0: i32) -> (i32, i32) {
    %c0_i32 = arith.constant 0 : i32
    %c0_i32_0 = arith.constant 0 : i32
    %c0_i32_1 = arith.constant 0 : i32
    return %c0_i32, %c0_i32_0 : i32, i32
  }
  func.func @transform_20(%arg0: i32) -> (i32, i32) {
    %c0_i32 = arith.constant 0 : i32
    %c0_i32_0 = arith.constant 0 : i32
    %c0_i32_1 = arith.constant 0 : i32
    return %c0_i32, %c0_i32_0 : i32, i32
  }
}

</mosaic_0001>

<llo_original>
// kernel: tpu_custom_call.1
$region0: #{tpu_custom_call.1}
  #allocation0 [shape = 'u32[]', space=smem, size = 0x4, offset = 0x4, fixed_abs, tag = 'smem constant byte address 0x4 - core index']
  #allocation1 [shape = 'u32[144,128]{1,0:T(1,128)}', space=vmem, size = 0x12000, scoped, tag = 'internal scratch']
  %s0 = inlined_call_operand.hbm [shape: f32[128,128], index: 0, kind: input, shape index: {}]
  %s1 = inlined_call_operand.hbm [shape: f32[128,128], index: 1, kind: input, shape index: {}]
  %s2 = inlined_call_operand.hbm [shape: f32[8,128], index: 2, kind: input, shape index: {}]
  %s3 = inlined_call_operand.vmem [shape: f32[8,128], index: 3, kind: input, shape index: {}]
  %s4 = inlined_call_operand.hbm [shape: f32[128,128], index: 4, kind: input, shape index: {}]
  %s5 = inlined_call_operand.vmem [shape: f32[1,128], index: 5, kind: input, shape index: {}]
  %s6 = inlined_call_operand.hbm [shape: f32[128,128], index: 6, kind: input, shape index: {}]
  %s7 = inlined_call_operand.vmem [shape: f32[1,128], index: 7, kind: input, shape index: {}]
  %s8 = inlined_call_operand.hbm [shape: f32[128,128], index: 8, kind: input, shape index: {}]
  %s9 = inlined_call_operand.vmem [shape: f32[1,128], index: 9, kind: input, shape index: {}]
  %s10 = inlined_call_operand.hbm [shape: f32[128,128], index: 10, kind: input, shape index: {}]
  %s11 = inlined_call_operand.vmem [shape: f32[1,128], index: 11, kind: input, shape index: {}]
  %s12 = inlined_call_operand.hbm [shape: f32[128,128], index: 12, kind: input, shape index: {}]
  %s13 = inlined_call_operand.vmem [shape: f32[1,128], index: 13, kind: input, shape index: {}]
  %s14 = inlined_call_operand.hbm [shape: f32[128,128], index: 14, kind: input, shape index: {}]
  %s15 = inlined_call_operand.vmem [shape: f32[1,128], index: 15, kind: input, shape index: {}]
  %s16 = inlined_call_operand.hbm [shape: f32[128,128], index: 16, kind: input, shape index: {}]
  %s17 = inlined_call_operand.vmem [shape: f32[1,128], index: 17, kind: input, shape index: {}]
  %s18 = inlined_call_operand.hbm [shape: f32[8,128], index: 18, kind: output, shape index: {0}]
  %s19 = inlined_call_operand.hbm [shape: f32[8,128], index: 19, kind: output, shape index: {1}]
  %s20 = inlined_call_operand.hbm [shape: f32[8,128], index: 20, kind: output, shape index: {2}]
  %21 = xla_tuple %s18, %s19, %s20
  %s22 = sld [smem:[#allocation0]]
  $region138: #{tpu_custom_call.1} parent=0
    _
  %s24 = ssub.s32 1, %s22
  %s25 = scalar_select 0, %s24, %s22
  $region1: #{tpu_custom_call.1} parent=0
    #allocation2 [shape = 'u8[65536]{0}', space=vmem, size = 0x10000, scoped, tag = 'input window, operand 0, single buffered']
    #allocation3 [shape = 's32[1]{0}', space=sflag, size = 0x4, scoped, tag = 'scoped memory for tpu_custom_call.1']
    #allocation4 [shape = 's32[1]{0}', space=sflag, size = 0x4, scoped, tag = 'scoped memory for tpu_custom_call.1']
    #allocation5 [shape = 'u8[65536]{0}', space=vmem, size = 0x10000, scoped, tag = 'input window, operand 1, single buffered']
    #allocation6 [shape = 's32[1]{0}', space=sflag, size = 0x4, scoped, tag = 'scoped memory for tpu_custom_call.1']
    #allocation7 [shape = 'u8[4096]{0}', space=vmem, size = 0x1000, scoped, tag = 'input window, operand 2, single buffered']
    #allocation8 [shape = 'u8[65536]{0}', space=vmem, size = 0x10000, scoped, tag = 'input window, operand 4, single buffered']
    #allocation9 [shape = 's32[1]{0}', space=sflag, size = 0x4, scoped, tag = 'scoped memory for tpu_custom_call.1']
    #allocation10 [shape = 'u8[65536]{0}', space=vmem, size = 0x10000, scoped, tag = 'input window, operand 6, single buffered']
    #allocation11 [shape = 'u8[65536]{0}', space=vmem, size = 0x10000, scoped, tag = 'input window, operand 8, single buffered']
    #allocation12 [shape = 's32[1]{0}', space=sflag, size = 0x4, scoped, tag = 'scoped memory for tpu_custom_call.1']
    #allocation13 [shape = 'u8[65536]{0}', space=vmem, size = 0x10000, scoped, tag = 'input window, operand 10, single buffered']
    #allocation14 [shape = 'u8[65536]{0}', space=vmem, size = 0x10000, scoped, tag = 'input window, operand 12, single buffered']
    #allocation15 [shape = 's32[1]{0}', space=sflag, size = 0x4, scoped, tag = 'scoped memory for tpu_custom_call.1']
    #allocation16 [shape = 'u8[65536]{0}', space=vmem, size = 0x10000, scoped, tag = 'input window, operand 14, single buffered']
    #allocation17 [shape = 'u8[65536]{0}', space=vmem, size = 0x10000, scoped, tag = 'input window, operand 16, single buffered']
    #allocation18 [shape = 's32[1]{0}', space=sflag, size = 0x4, scoped, tag = 'scoped memory for tpu_custom_call.1']
    #allocation19 [shape = 'u8[4096]{0}', space=vmem, size = 0x1000, scoped, tag = 'output window, operand 0, single buffered']
    #allocation20 [shape = 'u8[4096]{0}', space=vmem, size = 0x1000, scoped, tag = 'output window, operand 1, single buffered']
    #allocation21 [shape = 's32[1]{0}', space=sflag, size = 0x4, scoped, tag = 'scoped memory for tpu_custom_call.1']
    #allocation22 [shape = 'u8[4096]{0}', space=vmem, size = 0x1000, scoped, tag = 'output window, operand 2, single buffered']
    %26 = vsyncpa [#allocation3], 0
    %27 = vsyncpa [#allocation6], 0
    %28 = vsyncpa [#allocation9], 0
    %29 = vsyncpa [#allocation12], 0
    %30 = vsyncpa [#allocation15], 0
    %31 = vsyncpa [#allocation18], 0
    %32 = vsyncpa [#allocation4], 0
    %33 = vsyncpa [#allocation21], 0
    // Predicated region
    $region2: #{tpu_custom_call.1} parent=1 // pred_check
      _
    $region3: #{tpu_custom_call.1} parent=1 // pred_check_branch
      %35 = sbr.rel (0) target = $region5
    $region4: #{tpu_custom_call.1} parent=1 // pred_region
      %s37 = ssub.s32 2048, 2048
      %38 = vsyncadd [#allocation3], %s37
      %s39 = sshll.u32 [#allocation2], 4
      %s40 = int_to_ptr.vmem [resolvable:$true] %s39
      %45 = dma.hbm_to_vmem [thread:$0]  %s0, 2048, %s40, [#allocation3], 128, 128, 8
    $region5: #{tpu_custom_call.1} parent=1 // pred_fallthru
      _
    // Predicated region
    $region6: #{tpu_custom_call.1} parent=1 // pred_check
      _
    $region7: #{tpu_custom_call.1} parent=1 // pred_check_branch
      %47 = sbr.rel (0) target = $region9
    $region8: #{tpu_custom_call.1} parent=1 // pred_region
      %s49 = ssub.s32 2048, 2048
      %50 = vsyncadd [#allocation6], %s49
      %s51 = sshll.u32 [#allocation5], 4
      %s52 = int_to_ptr.vmem [resolvable:$true] %s51
      %57 = dma.hbm_to_vmem [thread:$0]  %s1, 2048, %s52, [#allocation6], 128, 128, 8
    $region9: #{tpu_custom_call.1} parent=1 // pred_fallthru
      _
    // Predicated region
    $region10: #{tpu_custom_call.1} parent=1 // pred_check
      _
    $region11: #{tpu_custom_call.1} parent=1 // pred_check_branch
      %59 = sbr.rel (0) target = $region13
    $region12: #{tpu_custom_call.1} parent=1 // pred_region
      %s61 = ssub.s32 128, 128
      %62 = vsyncadd [#allocation6], %s61
      %s64 = sshll.u32 [#allocation7], 4
      %s65 = int_to_ptr.vmem [resolvable:$true] %s64
      %67 = dma.hbm_to_vmem [thread:$0]  %s2, 128, %s65, [#allocation6]
    $region13: #{tpu_custom_call.1} parent=1 // pred_fallthru
      _
    // Predicated region
    $region14: #{tpu_custom_call.1} parent=1 // pred_check
      _
    $region15: #{tpu_custom_call.1} parent=1 // pred_check_branch
      %69 = sbr.rel (0) target = $region17
    $region16: #{tpu_custom_call.1} parent=1 // pred_region
      _
    $region17: #{tpu_custom_call.1} parent=1 // pred_fallthru
      _
    // Predicated region
    $region18: #{tpu_custom_call.1} parent=1 // pred_check
      _
    $region19: #{tpu_custom_call.1} parent=1 // pred_check_branch
      %71 = sbr.rel (0) target = $region21
    $region20: #{tpu_custom_call.1} parent=1 // pred_region
      %s73 = ssub.s32 2048, 2048
      %74 = vsyncadd [#allocation9], %s73
      %s75 = sshll.u32 [#allocation8], 4
      %s76 = int_to_ptr.vmem [resolvable:$true] %s75
      %81 = dma.hbm_to_vmem [thread:$0]  %s4, 2048, %s76, [#allocation9], 128, 128, 8
    $region21: #{tpu_custom_call.1} parent=1 // pred_fallthru
      _
    // Predicated region
    $region22: #{tpu_custom_call.1} parent=1 // pred_check
      _
    $region23: #{tpu_custom_call.1} parent=1 // pred_check_branch
      %83 = sbr.rel (0) target = $region25
    $region24: #{tpu_custom_call.1} parent=1 // pred_region
      _
    $region25: #{tpu_custom_call.1} parent=1 // pred_fallthru
      _
    // Predicated region
    $region26: #{tpu_custom_call.1} parent=1 // pred_check
      _
    $region27: #{tpu_custom_call.1} parent=1 // pred_check_branch
      %85 = sbr.rel (0) target = $region29
    $region28: #{tpu_custom_call.1} parent=1 // pred_region
      %s87 = ssub.s32 2048, 2048
      %88 = vsyncadd [#allocation9], %s87
      %s89 = sshll.u32 [#allocation10], 4
      %s90 = int_to_ptr.vmem [resolvable:$true] %s89
      %95 = dma.hbm_to_vmem [thread:$0]  %s6, 2048, %s90, [#allocation9], 128, 128, 8
    $region29: #{tpu_custom_call.1} parent=1 // pred_fallthru
      _
    // Predicated region
    $region30: #{tpu_custom_call.1} parent=1 // pred_check
      _
    $region31: #{tpu_custom_call.1} parent=1 // pred_check_branch
      %97 = sbr.rel (0) target = $region33
    $region32: #{tpu_custom_call.1} parent=1 // pred_region
      _
    $region33: #{tpu_custom_call.1} parent=1 // pred_fallthru
      _
    // Predicated region
    $region34: #{tpu_custom_call.1} parent=1 // pred_check
      _
    $region35: #{tpu_custom_call.1} parent=1 // pred_check_branch
      %99 = sbr.rel (0) target = $region37
    $region36: #{tpu_custom_call.1} parent=1 // pred_region
      %s101 = ssub.s32 2048, 2048
      %102 = vsyncadd [#allocation12], %s101
      %s103 = sshll.u32 [#allocation11], 4
      %s104 = int_to_ptr.vmem [resolvable:$true] %s103
      %109 = dma.hbm_to_vmem [thread:$0]  %s8, 2048, %s104, [#allocation12], 128, 128, 8
    $region37: #{tpu_custom_call.1} parent=1 // pred_fallthru
      _
    // Predicated region
    $region38: #{tpu_custom_call.1} parent=1 // pred_check
      _
    $region39: #{tpu_custom_call.1} parent=1 // pred_check_branch
      %111 = sbr.rel (0) target = $region41
    $region40: #{tpu_custom_call.1} parent=1 // pred_region
      _
    $region41: #{tpu_custom_call.1} parent=1 // pred_fallthru
      _
    // Predicated region
    $region42: #{tpu_custom_call.1} parent=1 // pred_check
      _
    $region43: #{tpu_custom_call.1} parent=1 // pred_check_branch
      %113 = sbr.rel (0) target = $region45
    $region44: #{tpu_custom_call.1} parent=1 // pred_region
      %s115 = ssub.s32 2048, 2048
      %116 = vsyncadd [#allocation12], %s115
      %s117 = sshll.u32 [#allocation13], 4
      %s118 = int_to_ptr.vmem [resolvable:$true] %s117
      %123 = dma.hbm_to_vmem [thread:$0]  %s10, 2048, %s118, [#allocation12], 128, 128, 8
    $region45: #{tpu_custom_call.1} parent=1 // pred_fallthru
      _
    // Predicated region
    $region46: #{tpu_custom_call.1} parent=1 // pred_check
      _
    $region47: #{tpu_custom_call.1} parent=1 // pred_check_branch
      %125 = sbr.rel (0) target = $region49
    $region48: #{tpu_custom_call.1} parent=1 // pred_region
      _
    $region49: #{tpu_custom_call.1} parent=1 // pred_fallthru
      _
    // Predicated region
    $region50: #{tpu_custom_call.1} parent=1 // pred_check
      _
    $region51: #{tpu_custom_call.1} parent=1 // pred_check_branch
      %127 = sbr.rel (0) target = $region53
    $region52: #{tpu_custom_call.1} parent=1 // pred_region
      %s129 = ssub.s32 2048, 2048
      %130 = vsyncadd [#allocation15], %s129
      %s131 = sshll.u32 [#allocation14], 4
      %s132 = int_to_ptr.vmem [resolvable:$true] %s131
      %137 = dma.hbm_to_vmem [thread:$0]  %s12, 2048, %s132, [#allocation15], 128, 128, 8
    $region53: #{tpu_custom_call.1} parent=1 // pred_fallthru
      _
    // Predicated region
    $region54: #{tpu_custom_call.1} parent=1 // pred_check
      _
    $region55: #{tpu_custom_call.1} parent=1 // pred_check_branch
      %139 = sbr.rel (0) target = $region57
    $region56: #{tpu_custom_call.1} parent=1 // pred_region
      _
    $region57: #{tpu_custom_call.1} parent=1 // pred_fallthru
      _
    // Predicated region
    $region58: #{tpu_custom_call.1} parent=1 // pred_check
      _
    $region59: #{tpu_custom_call.1} parent=1 // pred_check_branch
      %141 = sbr.rel (0) target = $region61
    $region60: #{tpu_custom_call.1} parent=1 // pred_region
      %s143 = ssub.s32 2048, 2048
      %144 = vsyncadd [#allocation15], %s143
      %s145 = sshll.u32 [#allocation16], 4
      %s146 = int_to_ptr.vmem [resolvable:$true] %s145
      %151 = dma.hbm_to_vmem [thread:$0]  %s14, 2048, %s146, [#allocation15], 128, 128, 8
    $region61: #{tpu_custom_call.1} parent=1 // pred_fallthru
      _
    // Predicated region
    $region62: #{tpu_custom_call.1} parent=1 // pred_check
      _
    $region63: #{tpu_custom_call.1} parent=1 // pred_check_branch
      %153 = sbr.rel (0) target = $region65
    $region64: #{tpu_custom_call.1} parent=1 // pred_region
      _
    $region65: #{tpu_custom_call.1} parent=1 // pred_fallthru
      _
    // Predicated region
    $region66: #{tpu_custom_call.1} parent=1 // pred_check
      _
    $region67: #{tpu_custom_call.1} parent=1 // pred_check_branch
      %155 = sbr.rel (0) target = $region69
    $region68: #{tpu_custom_call.1} parent=1 // pred_region
      %s157 = ssub.s32 2048, 2048
      %158 = vsyncadd [#allocation18], %s157
      %s159 = sshll.u32 [#allocation17], 4
      %s160 = int_to_ptr.vmem [resolvable:$true] %s159
      %165 = dma.hbm_to_vmem [thread:$0]  %s16, 2048, %s160, [#allocation18], 128, 128, 8
    $region69: #{tpu_custom_call.1} parent=1 // pred_fallthru
      _
    // Predicated region
    $region70: #{tpu_custom_call.1} parent=1 // pred_check
      _
    $region71: #{tpu_custom_call.1} parent=1 // pred_check_branch
      %167 = sbr.rel (0) target = $region73
    $region72: #{tpu_custom_call.1} parent=1 // pred_region
      _
    $region73: #{tpu_custom_call.1} parent=1 // pred_fallthru
      _
    // Predicated region
    $region74: #{tpu_custom_call.1} parent=1 // pred_check
      _
    $region75: #{tpu_custom_call.1} parent=1 // pred_check_branch
      %169 = sbr.rel (0) target = $region77
    $region76: #{tpu_custom_call.1} parent=1 // pred_region
      %170 = dma.done [#allocation3], 2048
    $region77: #{tpu_custom_call.1} parent=1 // pred_fallthru
      _
    // Predicated region
    $region78: #{tpu_custom_call.1} parent=1 // pred_check
      _
    $region79: #{tpu_custom_call.1} parent=1 // pred_check_branch
      %172 = sbr.rel (0) target = $region81
    $region80: #{tpu_custom_call.1} parent=1 // pred_region
      %173 = dma.done [#allocation6], 2048
    $region81: #{tpu_custom_call.1} parent=1 // pred_fallthru
      _
    // Predicated region
    $region82: #{tpu_custom_call.1} parent=1 // pred_check
      _
    $region83: #{tpu_custom_call.1} parent=1 // pred_check_branch
      %175 = sbr.rel (0) target = $region85
    $region84: #{tpu_custom_call.1} parent=1 // pred_region
      %176 = dma.done [#allocation6], 128
    $region85: #{tpu_custom_call.1} parent=1 // pred_fallthru
      _
    // Predicated region
    $region86: #{tpu_custom_call.1} parent=1 // pred_check
      _
    $region87: #{tpu_custom_call.1} parent=1 // pred_check_branch
      %178 = sbr.rel (0) target = $region89
    $region88: #{tpu_custom_call.1} parent=1 // pred_region
      %179 = dma.done [#allocation9], 2048
    $region89: #{tpu_custom_call.1} parent=1 // pred_fallthru
      _
    // Predicated region
    $region90: #{tpu_custom_call.1} parent=1 // pred_check
      _
    $region91: #{tpu_custom_call.1} parent=1 // pred_check_branch
      %181 = sbr.rel (0) target = $region93
    $region92: #{tpu_custom_call.1} parent=1 // pred_region
      %182 = dma.done [#allocation9], 2048
    $region93: #{tpu_custom_call.1} parent=1 // pred_fallthru
      _
    // Predicated region
    $region94: #{tpu_custom_call.1} parent=1 // pred_check
      _
    $region95: #{tpu_custom_call.1} parent=1 // pred_check_branch
      %184 = sbr.rel (0) target = $region97
    $region96: #{tpu_custom_call.1} parent=1 // pred_region
      %185 = dma.done [#allocation12], 2048
    $region97: #{tpu_custom_call.1} parent=1 // pred_fallthru
      _
    // Predicated region
    $region98: #{tpu_custom_call.1} parent=1 // pred_check
      _
    $region99: #{tpu_custom_call.1} parent=1 // pred_check_branch
      %187 = sbr.rel (0) target = $region101
    $region100: #{tpu_custom_call.1} parent=1 // pred_region
      %188 = dma.done [#allocation12], 2048
    $region101: #{tpu_custom_call.1} parent=1 // pred_fallthru
      _
    // Predicated region
    $region102: #{tpu_custom_call.1} parent=1 // pred_check
      _
    $region103: #{tpu_custom_call.1} parent=1 // pred_check_branch
      %190 = sbr.rel (0) target = $region105
    $region104: #{tpu_custom_call.1} parent=1 // pred_region
      %191 = dma.done [#allocation15], 2048
    $region105: #{tpu_custom_call.1} parent=1 // pred_fallthru
      _
    // Predicated region
    $region106: #{tpu_custom_call.1} parent=1 // pred_check
      _
    $region107: #{tpu_custom_call.1} parent=1 // pred_check_branch
      %193 = sbr.rel (0) target = $region109
    $region108: #{tpu_custom_call.1} parent=1 // pred_region
      %194 = dma.done [#allocation15], 2048
    $region109: #{tpu_custom_call.1} parent=1 // pred_fallthru
      _
    // Predicated region
    $region110: #{tpu_custom_call.1} parent=1 // pred_check
      _
    $region111: #{tpu_custom_call.1} parent=1 // pred_check_branch
      %196 = sbr.rel (0) target = $region113
    $region112: #{tpu_custom_call.1} parent=1 // pred_region
      %197 = dma.done [#allocation18], 2048
    $region113: #{tpu_custom_call.1} parent=1 // pred_fallthru
      _
    %v198 = vld [vmem:[#allocation2] sm:$0xff]
    %v199 = vld [vmem:[#allocation2 + $0x8] sm:$0xff]
    %v200 = vld [vmem:[#allocation2 + $0x10] sm:$0xff]
    %v201 = vld [vmem:[#allocation2 + $0x18] sm:$0xff]
    %v202 = vld [vmem:[#allocation2 + $0x20] sm:$0xff]
    %v203 = vld [vmem:[#allocation2 + $0x28] sm:$0xff]
    %v204 = vld [vmem:[#allocation2 + $0x30] sm:$0xff]
    %v205 = vld [vmem:[#allocation2 + $0x38] sm:$0xff]
    %v206 = vld [vmem:[#allocation2 + $0x40] sm:$0xff]
    %v207 = vld [vmem:[#allocation2 + $0x48] sm:$0xff]
    %v208 = vld [vmem:[#allocation2 + $0x50] sm:$0xff]
    %v209 = vld [vmem:[#allocation2 + $0x58] sm:$0xff]
    %v210 = vld [vmem:[#allocation2 + $0x60] sm:$0xff]
    %v211 = vld [vmem:[#allocation2 + $0x68] sm:$0xff]
    %v212 = vld [vmem:[#allocation2 + $0x70] sm:$0xff]
    %v213 = vld [vmem:[#allocation2 + $0x78] sm:$0xff]
    %v214 = vld [vmem:[#allocation5] sm:$0xff]
    %v215 = vld [vmem:[#allocation5 + $0x8] sm:$0xff]
    %v216 = vld [vmem:[#allocation5 + $0x10] sm:$0xff]
    %v217 = vld [vmem:[#allocation5 + $0x18] sm:$0xff]
    %v218 = vld [vmem:[#allocation5 + $0x20] sm:$0xff]
    %v219 = vld [vmem:[#allocation5 + $0x28] sm:$0xff]
    %v220 = vld [vmem:[#allocation5 + $0x30] sm:$0xff]
    %v221 = vld [vmem:[#allocation5 + $0x38] sm:$0xff]
    %v222 = vld [vmem:[#allocation5 + $0x40] sm:$0xff]
    %v223 = vld [vmem:[#allocation5 + $0x48] sm:$0xff]
    %v224 = vld [vmem:[#allocation5 + $0x50] sm:$0xff]
    %v225 = vld [vmem:[#allocation5 + $0x58] sm:$0xff]
    %v226 = vld [vmem:[#allocation5 + $0x60] sm:$0xff]
    %v227 = vld [vmem:[#allocation5 + $0x68] sm:$0xff]
    %v228 = vld [vmem:[#allocation5 + $0x70] sm:$0xff]
    %v229 = vld [vmem:[#allocation5 + $0x78] sm:$0xff]
    %v230 = vld [vmem:[#allocation8] sm:$0xff]
    %v231 = vld [vmem:[#allocation8 + $0x8] sm:$0xff]
    %v232 = vld [vmem:[#allocation8 + $0x10] sm:$0xff]
    %v233 = vld [vmem:[#allocation8 + $0x18] sm:$0xff]
    %v234 = vld [vmem:[#allocation8 + $0x20] sm:$0xff]
    %v235 = vld [vmem:[#allocation8 + $0x28] sm:$0xff]
    %v236 = vld [vmem:[#allocation8 + $0x30] sm:$0xff]
    %v237 = vld [vmem:[#allocation8 + $0x38] sm:$0xff]
    %v238 = vld [vmem:[#allocation8 + $0x40] sm:$0xff]
    %v239 = vld [vmem:[#allocation8 + $0x48] sm:$0xff]
    %v240 = vld [vmem:[#allocation8 + $0x50] sm:$0xff]
    %v241 = vld [vmem:[#allocation8 + $0x58] sm:$0xff]
    %v242 = vld [vmem:[#allocation8 + $0x60] sm:$0xff]
    %v243 = vld [vmem:[#allocation8 + $0x68] sm:$0xff]
    %v244 = vld [vmem:[#allocation8 + $0x70] sm:$0xff]
    %v245 = vld [vmem:[#allocation8 + $0x78] sm:$0xff]
    %v246 = vld [vmem:[%s5] sm:$0x1]
    %247 = vmatprep.subr.mxu0 0.0
    %248 = vmatpush1.msra.mxu0 %v230
    %249 = vmatprep.subr.mxu0 0.0
    %250 = vmatpush1.msra.mxu0 %v231
    %251 = vmatprep.subr.mxu0 0.0
    %252 = vmatpush1.msra.mxu0 %v232
    %253 = vmatprep.subr.mxu0 0.0
    %254 = vmatpush1.msra.mxu0 %v233
    %255 = vmatprep.subr.mxu0 0.0
    %256 = vmatpush1.msra.mxu0 %v234
    %257 = vmatprep.subr.mxu0 0.0
    %258 = vmatpush1.msra.mxu0 %v235
    %259 = vmatprep.subr.mxu0 0.0
    %260 = vmatpush1.msra.mxu0 %v236
    %261 = vmatprep.subr.mxu0 0.0
    %262 = vmatpush1.msra.mxu0 %v237
    %263 = vmatprep.subr.mxu0 0.0
    %264 = vmatpush1.msra.mxu0 %v238
    %265 = vmatprep.subr.mxu0 0.0
    %266 = vmatpush1.msra.mxu0 %v239
    %267 = vmatprep.subr.mxu0 0.0
    %268 = vmatpush1.msra.mxu0 %v240
    %269 = vmatprep.subr.mxu0 0.0
    %270 = vmatpush1.msra.mxu0 %v241
    %271 = vmatprep.subr.mxu0 0.0
    %272 = vmatpush1.msra.mxu0 %v242
    %273 = vmatprep.subr.mxu0 0.0
    %274 = vmatpush1.msra.mxu0 %v243
    %275 = vmatprep.subr.mxu0 0.0
    %276 = vmatpush1.msra.mxu0 %v244
    %277 = vmatprep.subr.mxu0 0.0
    %278 = vmatpush1.msra.mxu0 %v245
    %279 = vmatprep.subr.mxu0 0.0
    %280 = vmatpush1.msra.mxu0 0.0
    %281 = vmatprep.subr.mxu0 0.0
    %282 = vmatpush1.msra.mxu0 0.0
    %283 = vmatprep.subr.mxu0 0.0
    %284 = vmatpush1.msra.mxu0 0.0
    %285 = vmatprep.subr.mxu0 0.0
    %286 = vmatpush1.msra.mxu0 0.0
    %287 = vmatprep.subr.mxu0 0.0
    %288 = vmatpush1.msra.mxu0 0.0
    %289 = vmatprep.subr.mxu0 0.0
    %290 = vmatpush1.msra.mxu0 0.0
    %291 = vmatprep.subr.mxu0 0.0
    %292 = vmatpush1.msra.mxu0 0.0
    %293 = vmatprep.subr.mxu0 0.0
    %294 = vmatpush1.msra.mxu0 0.0
    %295 = vmatprep.subr.mxu0 0.0
    %296 = vmatpush1.msra.mxu0 0.0
    %297 = vmatprep.subr.mxu0 0.0
    %298 = vmatpush1.msra.mxu0 0.0
    %299 = vmatprep.subr.mxu0 0.0
    %300 = vmatpush1.msra.mxu0 0.0
    %301 = vmatprep.subr.mxu0 0.0
    %302 = vmatpush1.msra.mxu0 0.0
    %303 = vmatprep.subr.mxu0 0.0
    %304 = vmatpush1.msra.mxu0 0.0
    %305 = vmatprep.subr.mxu0 0.0
    %306 = vmatpush1.msra.mxu0 0.0
    %307 = vmatprep.subr.mxu0 0.0
    %308 = vmatpush1.msra.mxu0 0.0
    %309 = vmatprep.subr.mxu0 0.0
    %310 = vmatpush1.msra.mxu0 0.0
    %311 = vmatprep.mubr.f32.mxu0 0.0
    %312 = vmatmul.mubr.f32.gmra.mrb[0].mxu0 %v214
    %v313 = vpop.f32.mrb[0].mxu0
    %v314 = vadd.f32 0.0, %v313
    %v315 = vpop.f32.mrb[0].mxu0
    %316 = vmatprep.mubr.f32.mxu0 0.0
    %317 = vmatmul.mubr.f32.gmra.mrb[0].mxu0 %v215
    %v318 = vpop.f32.mrb[0].mxu0
    %v319 = vadd.f32 0.0, %v318
    %v320 = vpop.f32.mrb[0].mxu0
    %321 = vmatprep.mubr.f32.mxu0 0.0
    %322 = vmatmul.mubr.f32.gmra.mrb[0].mxu0 %v216
    %v323 = vpop.f32.mrb[0].mxu0
    %v324 = vadd.f32 0.0, %v323
    %v325 = vpop.f32.mrb[0].mxu0
    %326 = vmatprep.mubr.f32.mxu0 0.0
    %327 = vmatmul.mubr.f32.gmra.mrb[0].mxu0 %v217
    %v328 = vpop.f32.mrb[0].mxu0
    %v329 = vadd.f32 0.0, %v328
    %v330 = vpop.f32.mrb[0].mxu0
    %331 = vmatprep.mubr.f32.mxu0 0.0
    %332 = vmatmul.mubr.f32.gmra.mrb[0].mxu0 %v218
    %v333 = vpop.f32.mrb[0].mxu0
    %v334 = vadd.f32 0.0, %v333
    %v335 = vpop.f32.mrb[0].mxu0
    %336 = vmatprep.mubr.f32.mxu0 0.0
    %337 = vmatmul.mubr.f32.gmra.mrb[0].mxu0 %v219
    %v338 = vpop.f32.mrb[0].mxu0
    %v339 = vadd.f32 0.0, %v338
    %v340 = vpop.f32.mrb[0].mxu0
    %341 = vmatprep.mubr.f32.mxu0 0.0
    %342 = vmatmul.mubr.f32.gmra.mrb[0].mxu0 %v220
    %v343 = vpop.f32.mrb[0].mxu0
    %v344 = vadd.f32 0.0, %v343
    %v345 = vpop.f32.mrb[0].mxu0
    %346 = vmatprep.mubr.f32.mxu0 0.0
    %347 = vmatmul.mubr.f32.gmra.mrb[0].mxu0 %v221
    %v348 = vpop.f32.mrb[0].mxu0
    %v349 = vadd.f32 0.0, %v348
    %v350 = vpop.f32.mrb[0].mxu0
    %351 = vmatprep.mubr.f32.mxu0 0.0
    %352 = vmatmul.mubr.f32.gmra.mrb[0].mxu0 %v222
    %v353 = vpop.f32.mrb[0].mxu0
    %v354 = vadd.f32 0.0, %v353
    %v355 = vpop.f32.mrb[0].mxu0
    %356 = vmatprep.mubr.f32.mxu0 0.0
    %357 = vmatmul.mubr.f32.gmra.mrb[0].mxu0 %v223
    %v358 = vpop.f32.mrb[0].mxu0
    %v359 = vadd.f32 0.0, %v358
    %v360 = vpop.f32.mrb[0].mxu0
    %361 = vmatprep.mubr.f32.mxu0 0.0
    %362 = vmatmul.mubr.f32.gmra.mrb[0].mxu0 %v224
    %v363 = vpop.f32.mrb[0].mxu0
    %v364 = vadd.f32 0.0, %v363
    %v365 = vpop.f32.mrb[0].mxu0
    %366 = vmatprep.mubr.f32.mxu0 0.0
    %367 = vmatmul.mubr.f32.gmra.mrb[0].mxu0 %v225
    %v368 = vpop.f32.mrb[0].mxu0
    %v369 = vadd.f32 0.0, %v368
    %v370 = vpop.f32.mrb[0].mxu0
    %371 = vmatprep.mubr.f32.mxu0 0.0
    %372 = vmatmul.mubr.f32.gmra.mrb[0].mxu0 %v226
    %v373 = vpop.f32.mrb[0].mxu0
    %v374 = vadd.f32 0.0, %v373
    %v375 = vpop.f32.mrb[0].mxu0
    %376 = vmatprep.mubr.f32.mxu0 0.0
    %377 = vmatmul.mubr.f32.gmra.mrb[0].mxu0 %v227
    %v378 = vpop.f32.mrb[0].mxu0
    %v379 = vadd.f32 0.0, %v378
    %v380 = vpop.f32.mrb[0].mxu0
    %381 = vmatprep.mubr.f32.mxu0 0.0
    %382 = vmatmul.mubr.f32.gmra.mrb[0].mxu0 %v228
    %v383 = vpop.f32.mrb[0].mxu0
    %v384 = vadd.f32 0.0, %v383
    %v385 = vpop.f32.mrb[0].mxu0
    %386 = vmatprep.mubr.f32.mxu0 0.0
    %387 = vmatmul.mubr.f32.gmra.mrb[0].mxu0 %v229
    %v388 = vpop.f32.mrb[0].mxu0
    %v389 = vadd.f32 0.0, %v388
    %v390 = vpop.f32.mrb[0].mxu0
    %391 = vdwg.mxu0
    %v393 = vlaneseq
    %v394 = vshrl.u32 %v393, 7
    %v395 = vsub.s32 0, %v394
    %v396 = vrot.slane %v246, %v395
    %398 = vmatprep.subr.mxu0 0.0
    %399 = vmatpush1.msra.mxu0 %v314
    %400 = vmatprep.subr.mxu0 0.0
    %401 = vmatpush1.msra.mxu0 %v319
    %402 = vmatprep.subr.mxu0 0.0
    %403 = vmatpush1.msra.mxu0 %v324
    %404 = vmatprep.subr.mxu0 0.0
    %405 = vmatpush1.msra.mxu0 %v329
    %406 = vmatprep.subr.mxu0 0.0
    %407 = vmatpush1.msra.mxu0 %v334
    %408 = vmatprep.subr.mxu0 0.0
    %409 = vmatpush1.msra.mxu0 %v339
    %410 = vmatprep.subr.mxu0 0.0
    %411 = vmatpush1.msra.mxu0 %v344
    %412 = vmatprep.subr.mxu0 0.0
    %413 = vmatpush1.msra.mxu0 %v349
    %414 = vmatprep.subr.mxu0 0.0
    %415 = vmatpush1.msra.mxu0 %v354
    %416 = vmatprep.subr.mxu0 0.0
    %417 = vmatpush1.msra.mxu0 %v359
    %418 = vmatprep.subr.mxu0 0.0
    %419 = vmatpush1.msra.mxu0 %v364
    %420 = vmatprep.subr.mxu0 0.0
    %421 = vmatpush1.msra.mxu0 %v369
    %422 = vmatprep.subr.mxu0 0.0
    %423 = vmatpush1.msra.mxu0 %v374
    %424 = vmatprep.subr.mxu0 0.0
    %425 = vmatpush1.msra.mxu0 %v379
    %426 = vmatprep.subr.mxu0 0.0
    %427 = vmatpush1.msra.mxu0 %v384
    %428 = vmatprep.subr.mxu0 0.0
    %429 = vmatpush1.msra.mxu0 %v389
    %430 = vmatprep.subr.mxu0 0.0
    %431 = vmatpush1.msra.mxu0 0.0
    %432 = vmatprep.subr.mxu0 0.0
    %433 = vmatpush1.msra.mxu0 0.0
    %434 = vmatprep.subr.mxu0 0.0
    %435 = vmatpush1.msra.mxu0 0.0
    %436 = vmatprep.subr.mxu0 0.0
    %437 = vmatpush1.msra.mxu0 0.0
    %438 = vmatprep.subr.mxu0 0.0
    %439 = vmatpush1.msra.mxu0 0.0
    %440 = vmatprep.subr.mxu0 0.0
    %441 = vmatpush1.msra.mxu0 0.0
    %442 = vmatprep.subr.mxu0 0.0
    %443 = vmatpush1.msra.mxu0 0.0
    %444 = vmatprep.subr.mxu0 0.0
    %445 = vmatpush1.msra.mxu0 0.0
    %446 = vmatprep.subr.mxu0 0.0
    %447 = vmatpush1.msra.mxu0 0.0
    %448 = vmatprep.subr.mxu0 0.0
    %449 = vmatpush1.msra.mxu0 0.0
    %450 = vmatprep.subr.mxu0 0.0
    %451 = vmatpush1.msra.mxu0 0.0
    %452 = vmatprep.subr.mxu0 0.0
    %453 = vmatpush1.msra.mxu0 0.0
    %454 = vmatprep.subr.mxu0 0.0
    %455 = vmatpush1.msra.mxu0 0.0
    %456 = vmatprep.subr.mxu0 0.0
    %457 = vmatpush1.msra.mxu0 0.0
    %458 = vmatprep.subr.mxu0 0.0
    %459 = vmatpush1.msra.mxu0 0.0
    %460 = vmatprep.subr.mxu0 0.0
    %461 = vmatpush1.msra.mxu0 0.0
    %462 = vmatprep.mubr.f32.mxu0 0.0
    %463 = vmatmul.mubr.f32.gmra.mrb[0].mxu0 %v198
    %v464 = vpop.f32.mrb[0].mxu0
    %v465 = vadd.f32 %v396, %v464
    %v466 = vpop.f32.mrb[0].mxu0
    %467 = vmatprep.mubr.f32.mxu0 0.0
    %468 = vmatmul.mubr.f32.gmra.mrb[0].mxu0 %v199
    %v469 = vpop.f32.mrb[0].mxu0
    %v470 = vadd.f32 %v396, %v469
    %v471 = vpop.f32.mrb[0].mxu0
    %472 = vmatprep.mubr.f32.mxu0 0.0
    %473 = vmatmul.mubr.f32.gmra.mrb[0].mxu0 %v200
    %v474 = vpop.f32.mrb[0].mxu0
    %v475 = vadd.f32 %v396, %v474
    %v476 = vpop.f32.mrb[0].mxu0
    %477 = vmatprep.mubr.f32.mxu0 0.0
    %478 = vmatmul.mubr.f32.gmra.mrb[0].mxu0 %v201
    %v479 = vpop.f32.mrb[0].mxu0
    %v480 = vadd.f32 %v396, %v479
    %v481 = vpop.f32.mrb[0].mxu0
    %482 = vmatprep.mubr.f32.mxu0 0.0
    %483 = vmatmul.mubr.f32.gmra.mrb[0].mxu0 %v202
    %v484 = vpop.f32.mrb[0].mxu0
    %v485 = vadd.f32 %v396, %v484
    %v486 = vpop.f32.mrb[0].mxu0
    %487 = vmatprep.mubr.f32.mxu0 0.0
    %488 = vmatmul.mubr.f32.gmra.mrb[0].mxu0 %v203
    %v489 = vpop.f32.mrb[0].mxu0
    %v490 = vadd.f32 %v396, %v489
    %v491 = vpop.f32.mrb[0].mxu0
    %492 = vmatprep.mubr.f32.mxu0 0.0
    %493 = vmatmul.mubr.f32.gmra.mrb[0].mxu0 %v204
    %v494 = vpop.f32.mrb[0].mxu0
    %v495 = vadd.f32 %v396, %v494
    %v496 = vpop.f32.mrb[0].mxu0
    %497 = vmatprep.mubr.f32.mxu0 0.0
    %498 = vmatmul.mubr.f32.gmra.mrb[0].mxu0 %v205
    %v499 = vpop.f32.mrb[0].mxu0
    %v500 = vadd.f32 %v396, %v499
    %v501 = vpop.f32.mrb[0].mxu0
    %502 = vmatprep.mubr.f32.mxu0 0.0
    %503 = vmatmul.mubr.f32.gmra.mrb[0].mxu0 %v206
    %v504 = vpop.f32.mrb[0].mxu0
    %v505 = vadd.f32 %v396, %v504
    %v506 = vpop.f32.mrb[0].mxu0
    %507 = vmatprep.mubr.f32.mxu0 0.0
    %508 = vmatmul.mubr.f32.gmra.mrb[0].mxu0 %v207
    %v509 = vpop.f32.mrb[0].mxu0
    %v510 = vadd.f32 %v396, %v509
    %v511 = vpop.f32.mrb[0].mxu0
    %512 = vmatprep.mubr.f32.mxu0 0.0
    %513 = vmatmul.mubr.f32.gmra.mrb[0].mxu0 %v208
    %v514 = vpop.f32.mrb[0].mxu0
    %v515 = vadd.f32 %v396, %v514
    %v516 = vpop.f32.mrb[0].mxu0
    %517 = vmatprep.mubr.f32.mxu0 0.0
    %518 = vmatmul.mubr.f32.gmra.mrb[0].mxu0 %v209
    %v519 = vpop.f32.mrb[0].mxu0
    %v520 = vadd.f32 %v396, %v519
    %v521 = vpop.f32.mrb[0].mxu0
    %522 = vmatprep.mubr.f32.mxu0 0.0
    %523 = vmatmul.mubr.f32.gmra.mrb[0].mxu0 %v210
    %v524 = vpop.f32.mrb[0].mxu0
    %v525 = vadd.f32 %v396, %v524
    %v526 = vpop.f32.mrb[0].mxu0
    %527 = vmatprep.mubr.f32.mxu0 0.0
    %528 = vmatmul.mubr.f32.gmra.mrb[0].mxu0 %v211
    %v529 = vpop.f32.mrb[0].mxu0
    %v530 = vadd.f32 %v396, %v529
    %v531 = vpop.f32.mrb[0].mxu0
    %532 = vmatprep.mubr.f32.mxu0 0.0
    %533 = vmatmul.mubr.f32.gmra.mrb[0].mxu0 %v212
    %v534 = vpop.f32.mrb[0].mxu0
    %v535 = vadd.f32 %v396, %v534
    %v536 = vpop.f32.mrb[0].mxu0
    %537 = vmatprep.mubr.f32.mxu0 0.0
    %538 = vmatmul.mubr.f32.gmra.mrb[0].mxu0 %v213
    %v539 = vpop.f32.mrb[0].mxu0
    %v540 = vadd.f32 %v396, %v539
    %v541 = vpop.f32.mrb[0].mxu0
    %542 = vdwg.mxu0
    %v543 = vmax.f32 %v465, 0.0
    %v544 = vmax.f32 %v470, 0.0
    %v545 = vmax.f32 %v475, 0.0
    %v546 = vmax.f32 %v480, 0.0
    %v547 = vmax.f32 %v485, 0.0
    %v548 = vmax.f32 %v490, 0.0
    %v549 = vmax.f32 %v495, 0.0
    %v550 = vmax.f32 %v500, 0.0
    %v551 = vmax.f32 %v505, 0.0
    %v552 = vmax.f32 %v510, 0.0
    %v553 = vmax.f32 %v515, 0.0
    %v554 = vmax.f32 %v520, 0.0
    %v555 = vmax.f32 %v525, 0.0
    %v556 = vmax.f32 %v530, 0.0
    %v557 = vmax.f32 %v535, 0.0
    %v558 = vmax.f32 %v540, 0.0
    %v559 = vld [vmem:[#allocation10] sm:$0xff]
    %v560 = vld [vmem:[#allocation10 + $0x8] sm:$0xff]
    %v561 = vld [vmem:[#allocation10 + $0x10] sm:$0xff]
    %v562 = vld [vmem:[#allocation10 + $0x18] sm:$0xff]
    %v563 = vld [vmem:[#allocation10 + $0x20] sm:$0xff]
    %v564 = vld [vmem:[#allocation10 + $0x28] sm:$0xff]
    %v565 = vld [vmem:[#allocation10 + $0x30] sm:$0xff]
    %v566 = vld [vmem:[#allocation10 + $0x38] sm:$0xff]
    %v567 = vld [vmem:[#allocation10 + $0x40] sm:$0xff]
    %v568 = vld [vmem:[#allocation10 + $0x48] sm:$0xff]
    %v569 = vld [vmem:[#allocation10 + $0x50] sm:$0xff]
    %v570 = vld [vmem:[#allocation10 + $0x58] sm:$0xff]
    %v571 = vld [vmem:[#allocation10 + $0x60] sm:$0xff]
    %v572 = vld [vmem:[#allocation10 + $0x68] sm:$0xff]
    %v573 = vld [vmem:[#allocation10 + $0x70] sm:$0xff]
    %v574 = vld [vmem:[#allocation10 + $0x78] sm:$0xff]
    %v575 = vld [vmem:[%s7] sm:$0x1]
    %576 = vmatprep.subr.mxu0 0.0
    %577 = vmatpush1.msra.mxu0 %v559
    %578 = vmatprep.subr.mxu0 0.0
    %579 = vmatpush1.msra.mxu0 %v560
    %580 = vmatprep.subr.mxu0 0.0
    %581 = vmatpush1.msra.mxu0 %v561
    %582 = vmatprep.subr.mxu0 0.0
    %583 = vmatpush1.msra.mxu0 %v562
    %584 = vmatprep.subr.mxu0 0.0
    %585 = vmatpush1.msra.mxu0 %v563
    %586 = vmatprep.subr.mxu0 0.0
    %587 = vmatpush1.msra.mxu0 %v564
    %588 = vmatprep.subr.mxu0 0.0
    %589 = vmatpush1.msra.mxu0 %v565
    %590 = vmatprep.subr.mxu0 0.0
    %591 = vmatpush1.msra.mxu0 %v566
    %592 = vmatprep.subr.mxu0 0.0
    %593 = vmatpush1.msra.mxu0 %v567
    %594 = vmatprep.subr.mxu0 0.0
    %595 = vmatpush1.msra.mxu0 %v568
    %596 = vmatprep.subr.mxu0 0.0
    %597 = vmatpush1.msra.mxu0 %v569
    %598 = vmatprep.subr.mxu0 0.0
    %599 = vmatpush1.msra.mxu0 %v570
    %600 = vmatprep.subr.mxu0 0.0
    %601 = vmatpush1.msra.mxu0 %v571
    %602 = vmatprep.subr.mxu0 0.0
    %603 = vmatpush1.msra.mxu0 %v572
    %604 = vmatprep.subr.mxu0 0.0
    %605 = vmatpush1.msra.mxu0 %v573
    %606 = vmatprep.subr.mxu0 0.0
    %607 = vmatpush1.msra.mxu0 %v574
    %608 = vmatprep.subr.mxu0 0.0
    %609 = vmatpush1.msra.mxu0 0.0
    %610 = vmatprep.subr.mxu0 0.0
    %611 = vmatpush1.msra.mxu0 0.0
    %612 = vmatprep.subr.mxu0 0.0
    %613 = vmatpush1.msra.mxu0 0.0
    %614 = vmatprep.subr.mxu0 0.0
    %615 = vmatpush1.msra.mxu0 0.0
    %616 = vmatprep.subr.mxu0 0.0
    %617 = vmatpush1.msra.mxu0 0.0
    %618 = vmatprep.subr.mxu0 0.0
    %619 = vmatpush1.msra.mxu0 0.0
    %620 = vmatprep.subr.mxu0 0.0
    %621 = vmatpush1.msra.mxu0 0.0
    %622 = vmatprep.subr.mxu0 0.0
    %623 = vmatpush1.msra.mxu0 0.0
    %624 = vmatprep.subr.mxu0 0.0
    %625 = vmatpush1.msra.mxu0 0.0
    %626 = vmatprep.subr.mxu0 0.0
    %627 = vmatpush1.msra.mxu0 0.0
    %628 = vmatprep.subr.mxu0 0.0
    %629 = vmatpush1.msra.mxu0 0.0
    %630 = vmatprep.subr.mxu0 0.0
    %631 = vmatpush1.msra.mxu0 0.0
    %632 = vmatprep.subr.mxu0 0.0
    %633 = vmatpush1.msra.mxu0 0.0
    %634 = vmatprep.subr.mxu0 0.0
    %635 = vmatpush1.msra.mxu0 0.0
    %636 = vmatprep.subr.mxu0 0.0
    %637 = vmatpush1.msra.mxu0 0.0
    %638 = vmatprep.subr.mxu0 0.0
    %639 = vmatpush1.msra.mxu0 0.0
    %640 = vmatprep.mubr.f32.mxu0 0.0
    %641 = vmatmul.mubr.f32.gmra.mrb[0].mxu0 %v543
    %v642 = vpop.f32.mrb[0].mxu0
    %v643 = vadd.f32 0.0, %v642
    %v644 = vpop.f32.mrb[0].mxu0
    %645 = vmatprep.mubr.f32.mxu0 0.0
    %646 = vmatmul.mubr.f32.gmra.mrb[0].mxu0 %v544
    %v647 = vpop.f32.mrb[0].mxu0
    %v648 = vadd.f32 0.0, %v647
    %v649 = vpop.f32.mrb[0].mxu0
    %650 = vmatprep.mubr.f32.mxu0 0.0
    %651 = vmatmul.mubr.f32.gmra.mrb[0].mxu0 %v545
    %v652 = vpop.f32.mrb[0].mxu0
    %v653 = vadd.f32 0.0, %v652
    %v654 = vpop.f32.mrb[0].mxu0
    %655 = vmatprep.mubr.f32.mxu0 0.0
    %656 = vmatmul.mubr.f32.gmra.mrb[0].mxu0 %v546
    %v657 = vpop.f32.mrb[0].mxu0
    %v658 = vadd.f32 0.0, %v657
    %v659 = vpop.f32.mrb[0].mxu0
    %660 = vmatprep.mubr.f32.mxu0 0.0
    %661 = vmatmul.mubr.f32.gmra.mrb[0].mxu0 %v547
    %v662 = vpop.f32.mrb[0].mxu0
    %v663 = vadd.f32 0.0, %v662
    %v664 = vpop.f32.mrb[0].mxu0
    %665 = vmatprep.mubr.f32.mxu0 0.0
    %666 = vmatmul.mubr.f32.gmra.mrb[0].mxu0 %v548
    %v667 = vpop.f32.mrb[0].mxu0
    %v668 = vadd.f32 0.0, %v667
    %v669 = vpop.f32.mrb[0].mxu0
    %670 = vmatprep.mubr.f32.mxu0 0.0
    %671 = vmatmul.mubr.f32.gmra.mrb[0].mxu0 %v549
    %v672 = vpop.f32.mrb[0].mxu0
    %v673 = vadd.f32 0.0, %v672
    %v674 = vpop.f32.mrb[0].mxu0
    %675 = vmatprep.mubr.f32.mxu0 0.0
    %676 = vmatmul.mubr.f32.gmra.mrb[0].mxu0 %v550
    %v677 = vpop.f32.mrb[0].mxu0
    %v678 = vadd.f32 0.0, %v677
    %v679 = vpop.f32.mrb[0].mxu0
    %680 = vmatprep.mubr.f32.mxu0 0.0
    %681 = vmatmul.mubr.f32.gmra.mrb[0].mxu0 %v551
    %v682 = vpop.f32.mrb[0].mxu0
    %v683 = vadd.f32 0.0, %v682
    %v684 = vpop.f32.mrb[0].mxu0
    %685 = vmatprep.mubr.f32.mxu0 0.0
    %686 = vmatmul.mubr.f32.gmra.mrb[0].mxu0 %v552
    %v687 = vpop.f32.mrb[0].mxu0
    %v688 = vadd.f32 0.0, %v687
    %v689 = vpop.f32.mrb[0].mxu0
    %690 = vmatprep.mubr.f32.mxu0 0.0
    %691 = vmatmul.mubr.f32.gmra.mrb[0].mxu0 %v553
    %v692 = vpop.f32.mrb[0].mxu0
    %v693 = vadd.f32 0.0, %v692
    %v694 = vpop.f32.mrb[0].mxu0
    %695 = vmatprep.mubr.f32.mxu0 0.0
    %696 = vmatmul.mubr.f32.gmra.mrb[0].mxu0 %v554
    %v697 = vpop.f32.mrb[0].mxu0
    %v698 = vadd.f32 0.0, %v697
    %v699 = vpop.f32.mrb[0].mxu0
    %700 = vmatprep.mubr.f32.mxu0 0.0
    %701 = vmatmul.mubr.f32.gmra.mrb[0].mxu0 %v555
    %v702 = vpop.f32.mrb[0].mxu0
    %v703 = vadd.f32 0.0, %v702
    %v704 = vpop.f32.mrb[0].mxu0
    %705 = vmatprep.mubr.f32.mxu0 0.0
    %706 = vmatmul.mubr.f32.gmra.mrb[0].mxu0 %v556
    %v707 = vpop.f32.mrb[0].mxu0
    %v708 = vadd.f32 0.0, %v707
    %v709 = vpop.f32.mrb[0].mxu0
    %710 = vmatprep.mubr.f32.mxu0 0.0
    %711 = vmatmul.mubr.f32.gmra.mrb[0].mxu0 %v557
    %v712 = vpop.f32.mrb[0].mxu0
    %v713 = vadd.f32 0.0, %v712
    %v714 = vpop.f32.mrb[0].mxu0
    %715 = vmatprep.mubr.f32.mxu0 0.0
    %716 = vmatmul.mubr.f32.gmra.mrb[0].mxu0 %v558
    %v717 = vpop.f32.mrb[0].mxu0
    %v718 = vadd.f32 0.0, %v717
    %v719 = vpop.f32.mrb[0].mxu0
    %720 = vdwg.mxu0
    %v722 = vlaneseq
    %v723 = vshrl.u32 %v722, 7
    %v724 = vsub.s32 0, %v723
    %v725 = vrot.slane %v575, %v724
    %727 = vmatprep.subr.mxu0 0.0
    %728 = vmatpush1.msra.mxu0 %v643
    %729 = vmatprep.subr.mxu0 0.0
    %730 = vmatpush1.msra.mxu0 %v648
    %731 = vmatprep.subr.mxu0 0.0
    %732 = vmatpush1.msra.mxu0 %v653
    %733 = vmatprep.subr.mxu0 0.0
    %734 = vmatpush1.msra.mxu0 %v658
    %735 = vmatprep.subr.mxu0 0.0
    %736 = vmatpush1.msra.mxu0 %v663
    %737 = vmatprep.subr.mxu0 0.0
    %738 = vmatpush1.msra.mxu0 %v668
    %739 = vmatprep.subr.mxu0 0.0
    %740 = vmatpush1.msra.mxu0 %v673
    %741 = vmatprep.subr.mxu0 0.0
    %742 = vmatpush1.msra.mxu0 %v678
    %743 = vmatprep.subr.mxu0 0.0
    %744 = vmatpush1.msra.mxu0 %v683
    %745 = vmatprep.subr.mxu0 0.0
    %746 = vmatpush1.msra.mxu0 %v688
    %747 = vmatprep.subr.mxu0 0.0
    %748 = vmatpush1.msra.mxu0 %v693
    %749 = vmatprep.subr.mxu0 0.0
    %750 = vmatpush1.msra.mxu0 %v698
    %751 = vmatprep.subr.mxu0 0.0
    %752 = vmatpush1.msra.mxu0 %v703
    %753 = vmatprep.subr.mxu0 0.0
    %754 = vmatpush1.msra.mxu0 %v708
    %755 = vmatprep.subr.mxu0 0.0
    %756 = vmatpush1.msra.mxu0 %v713
    %757 = vmatprep.subr.mxu0 0.0
    %758 = vmatpush1.msra.mxu0 %v718
    %759 = vmatprep.subr.mxu0 0.0
    %760 = vmatpush1.msra.mxu0 0.0
    %761 = vmatprep.subr.mxu0 0.0
    %762 = vmatpush1.msra.mxu0 0.0
    %763 = vmatprep.subr.mxu0 0.0
    %764 = vmatpush1.msra.mxu0 0.0
    %765 = vmatprep.subr.mxu0 0.0
    %766 = vmatpush1.msra.mxu0 0.0
    %767 = vmatprep.subr.mxu0 0.0
    %768 = vmatpush1.msra.mxu0 0.0
    %769 = vmatprep.subr.mxu0 0.0
    %770 = vmatpush1.msra.mxu0 0.0
    %771 = vmatprep.subr.mxu0 0.0
    %772 = vmatpush1.msra.mxu0 0.0
    %773 = vmatprep.subr.mxu0 0.0
    %774 = vmatpush1.msra.mxu0 0.0
    %775 = vmatprep.subr.mxu0 0.0
    %776 = vmatpush1.msra.mxu0 0.0
    %777 = vmatprep.subr.mxu0 0.0
    %778 = vmatpush1.msra.mxu0 0.0
    %779 = vmatprep.subr.mxu0 0.0
    %780 = vmatpush1.msra.mxu0 0.0
    %781 = vmatprep.subr.mxu0 0.0
    %782 = vmatpush1.msra.mxu0 0.0
    %783 = vmatprep.subr.mxu0 0.0
    %784 = vmatpush1.msra.mxu0 0.0
    %785 = vmatprep.subr.mxu0 0.0
    %786 = vmatpush1.msra.mxu0 0.0
    %787 = vmatprep.subr.mxu0 0.0
    %788 = vmatpush1.msra.mxu0 0.0
    %789 = vmatprep.subr.mxu0 0.0
    %790 = vmatpush1.msra.mxu0 0.0
    %791 = vmatprep.mubr.f32.mxu0 0.0
    %792 = vmatmul.mubr.f32.gmra.mrb[0].mxu0 %v198
    %v793 = vpop.f32.mrb[0].mxu0
    %v794 = vadd.f32 %v725, %v793
    %v795 = vpop.f32.mrb[0].mxu0
    %796 = vmatprep.mubr.f32.mxu0 0.0
    %797 = vmatmul.mubr.f32.gmra.mrb[0].mxu0 %v199
    %v798 = vpop.f32.mrb[0].mxu0
    %v799 = vadd.f32 %v725, %v798
    %v800 = vpop.f32.mrb[0].mxu0
    %801 = vmatprep.mubr.f32.mxu0 0.0
    %802 = vmatmul.mubr.f32.gmra.mrb[0].mxu0 %v200
    %v803 = vpop.f32.mrb[0].mxu0
    %v804 = vadd.f32 %v725, %v803
    %v805 = vpop.f32.mrb[0].mxu0
    %806 = vmatprep.mubr.f32.mxu0 0.0
    %807 = vmatmul.mubr.f32.gmra.mrb[0].mxu0 %v201
    %v808 = vpop.f32.mrb[0].mxu0
    %v809 = vadd.f32 %v725, %v808
    %v810 = vpop.f32.mrb[0].mxu0
    %811 = vmatprep.mubr.f32.mxu0 0.0
    %812 = vmatmul.mubr.f32.gmra.mrb[0].mxu0 %v202
    %v813 = vpop.f32.mrb[0].mxu0
    %v814 = vadd.f32 %v725, %v813
    %v815 = vpop.f32.mrb[0].mxu0
    %816 = vmatprep.mubr.f32.mxu0 0.0
    %817 = vmatmul.mubr.f32.gmra.mrb[0].mxu0 %v203
    %v818 = vpop.f32.mrb[0].mxu0
    %v819 = vadd.f32 %v725, %v818
    %v820 = vpop.f32.mrb[0].mxu0
    %821 = vmatprep.mubr.f32.mxu0 0.0
    %822 = vmatmul.mubr.f32.gmra.mrb[0].mxu0 %v204
    %v823 = vpop.f32.mrb[0].mxu0
    %v824 = vadd.f32 %v725, %v823
    %v825 = vpop.f32.mrb[0].mxu0
    %826 = vmatprep.mubr.f32.mxu0 0.0
    %827 = vmatmul.mubr.f32.gmra.mrb[0].mxu0 %v205
    %v828 = vpop.f32.mrb[0].mxu0
    %v829 = vadd.f32 %v725, %v828
    %v830 = vpop.f32.mrb[0].mxu0
    %831 = vmatprep.mubr.f32.mxu0 0.0
    %832 = vmatmul.mubr.f32.gmra.mrb[0].mxu0 %v206
    %v833 = vpop.f32.mrb[0].mxu0
    %v834 = vadd.f32 %v725, %v833
    %v835 = vpop.f32.mrb[0].mxu0
    %836 = vmatprep.mubr.f32.mxu0 0.0
    %837 = vmatmul.mubr.f32.gmra.mrb[0].mxu0 %v207
    %v838 = vpop.f32.mrb[0].mxu0
    %v839 = vadd.f32 %v725, %v838
    %v840 = vpop.f32.mrb[0].mxu0
    %841 = vmatprep.mubr.f32.mxu0 0.0
    %842 = vmatmul.mubr.f32.gmra.mrb[0].mxu0 %v208
    %v843 = vpop.f32.mrb[0].mxu0
    %v844 = vadd.f32 %v725, %v843
    %v845 = vpop.f32.mrb[0].mxu0
    %846 = vmatprep.mubr.f32.mxu0 0.0
    %847 = vmatmul.mubr.f32.gmra.mrb[0].mxu0 %v209
    %v848 = vpop.f32.mrb[0].mxu0
    %v849 = vadd.f32 %v725, %v848
    %v850 = vpop.f32.mrb[0].mxu0
    %851 = vmatprep.mubr.f32.mxu0 0.0
    %852 = vmatmul.mubr.f32.gmra.mrb[0].mxu0 %v210
    %v853 = vpop.f32.mrb[0].mxu0
    %v854 = vadd.f32 %v725, %v853
    %v855 = vpop.f32.mrb[0].mxu0
    %856 = vmatprep.mubr.f32.mxu0 0.0
    %857 = vmatmul.mubr.f32.gmra.mrb[0].mxu0 %v211
    %v858 = vpop.f32.mrb[0].mxu0
    %v859 = vadd.f32 %v725, %v858
    %v860 = vpop.f32.mrb[0].mxu0
    %861 = vmatprep.mubr.f32.mxu0 0.0
    %862 = vmatmul.mubr.f32.gmra.mrb[0].mxu0 %v212
    %v863 = vpop.f32.mrb[0].mxu0
    %v864 = vadd.f32 %v725, %v863
    %v865 = vpop.f32.mrb[0].mxu0
    %866 = vmatprep.mubr.f32.mxu0 0.0
    %867 = vmatmul.mubr.f32.gmra.mrb[0].mxu0 %v213
    %v868 = vpop.f32.mrb[0].mxu0
    %v869 = vadd.f32 %v725, %v868
    %v870 = vpop.f32.mrb[0].mxu0
    %871 = vdwg.mxu0
    %v872 = vld [vmem:[#allocation7] sm:$0xff]
    %873 = vmatprep.subr.mxu0 0.0
    %874 = vmatpush1.msra.mxu0 %v794
    %875 = vmatprep.subr.mxu0 0.0
    %876 = vmatpush1.msra.mxu0 %v799
    %877 = vmatprep.subr.mxu0 0.0
    %878 = vmatpush1.msra.mxu0 %v804
    %879 = vmatprep.subr.mxu0 0.0
    %880 = vmatpush1.msra.mxu0 %v809
    %881 = vmatprep.subr.mxu0 0.0
    %882 = vmatpush1.msra.mxu0 %v814
    %883 = vmatprep.subr.mxu0 0.0
    %884 = vmatpush1.msra.mxu0 %v819
    %885 = vmatprep.subr.mxu0 0.0
    %886 = vmatpush1.msra.mxu0 %v824
    %887 = vmatprep.subr.mxu0 0.0
    %888 = vmatpush1.msra.mxu0 %v829
    %889 = vmatprep.subr.mxu0 0.0
    %890 = vmatpush1.msra.mxu0 %v834
    %891 = vmatprep.subr.mxu0 0.0
    %892 = vmatpush1.msra.mxu0 %v839
    %893 = vmatprep.subr.mxu0 0.0
    %894 = vmatpush1.msra.mxu0 %v844
    %895 = vmatprep.subr.mxu0 0.0
    %896 = vmatpush1.msra.mxu0 %v849
    %897 = vmatprep.subr.mxu0 0.0
    %898 = vmatpush1.msra.mxu0 %v854
    %899 = vmatprep.subr.mxu0 0.0
    %900 = vmatpush1.msra.mxu0 %v859
    %901 = vmatprep.subr.mxu0 0.0
    %902 = vmatpush1.msra.mxu0 %v864
    %903 = vmatprep.subr.mxu0 0.0
    %904 = vmatpush1.msra.mxu0 %v869
    %905 = vmatprep.subr.mxu0 0.0
    %906 = vmatpush1.msra.mxu0 0.0
    %907 = vmatprep.subr.mxu0 0.0
    %908 = vmatpush1.msra.mxu0 0.0
    %909 = vmatprep.subr.mxu0 0.0
    %910 = vmatpush1.msra.mxu0 0.0
    %911 = vmatprep.subr.mxu0 0.0
    %912 = vmatpush1.msra.mxu0 0.0
    %913 = vmatprep.subr.mxu0 0.0
    %914 = vmatpush1.msra.mxu0 0.0
    %915 = vmatprep.subr.mxu0 0.0
    %916 = vmatpush1.msra.mxu0 0.0
    %917 = vmatprep.subr.mxu0 0.0
    %918 = vmatpush1.msra.mxu0 0.0
    %919 = vmatprep.subr.mxu0 0.0
    %920 = vmatpush1.msra.mxu0 0.0
    %921 = vmatprep.subr.mxu0 0.0
    %922 = vmatpush1.msra.mxu0 0.0
    %923 = vmatprep.subr.mxu0 0.0
    %924 = vmatpush1.msra.mxu0 0.0
    %925 = vmatprep.subr.mxu0 0.0
    %926 = vmatpush1.msra.mxu0 0.0
    %927 = vmatprep.subr.mxu0 0.0
    %928 = vmatpush1.msra.mxu0 0.0
    %929 = vmatprep.subr.mxu0 0.0
    %930 = vmatpush1.msra.mxu0 0.0
    %931 = vmatprep.subr.mxu0 0.0
    %932 = vmatpush1.msra.mxu0 0.0
    %933 = vmatprep.subr.mxu0 0.0
    %934 = vmatpush1.msra.mxu0 0.0
    %935 = vmatprep.subr.mxu0 0.0
    %936 = vmatpush1.msra.mxu0 0.0
    %937 = vmatprep.mubr.f32.mxu0 0.0
    %938 = vmatmul.mubr.f32.gmra.mrb[0].mxu0 %v872
    %v939 = vpop.f32.mrb[0].mxu0
    %v940 = vadd.f32 0.0, %v939
    %v941 = vpop.f32.mrb[0].mxu0
    %942 = vdwg.mxu0
    %v943 = vld [vmem:[#allocation11] sm:$0xff]
    %v944 = vld [vmem:[#allocation11 + $0x8] sm:$0xff]
    %v945 = vld [vmem:[#allocation11 + $0x10] sm:$0xff]
    %v946 = vld [vmem:[#allocation11 + $0x18] sm:$0xff]
    %v947 = vld [vmem:[#allocation11 + $0x20] sm:$0xff]
    %v948 = vld [vmem:[#allocation11 + $0x28] sm:$0xff]
    %v949 = vld [vmem:[#allocation11 + $0x30] sm:$0xff]
    %v950 = vld [vmem:[#allocation11 + $0x38] sm:$0xff]
    %v951 = vld [vmem:[#allocation11 + $0x40] sm:$0xff]
    %v952 = vld [vmem:[#allocation11 + $0x48] sm:$0xff]
    %v953 = vld [vmem:[#allocation11 + $0x50] sm:$0xff]
    %v954 = vld [vmem:[#allocation11 + $0x58] sm:$0xff]
    %v955 = vld [vmem:[#allocation11 + $0x60] sm:$0xff]
    %v956 = vld [vmem:[#allocation11 + $0x68] sm:$0xff]
    %v957 = vld [vmem:[#allocation11 + $0x70] sm:$0xff]
    %v958 = vld [vmem:[#allocation11 + $0x78] sm:$0xff]
    %v959 = vld [vmem:[%s9] sm:$0x1]
    %v960 = vld [vmem:[#allocation13] sm:$0xff]
    %v961 = vld [vmem:[#allocation13 + $0x8] sm:$0xff]
    %v962 = vld [vmem:[#allocation13 + $0x10] sm:$0xff]
    %v963 = vld [vmem:[#allocation13 + $0x18] sm:$0xff]
    %v964 = vld [vmem:[#allocation13 + $0x20] sm:$0xff]
    %v965 = vld [vmem:[#allocation13 + $0x28] sm:$0xff]
    %v966 = vld [vmem:[#allocation13 + $0x30] sm:$0xff]
    %v967 = vld [vmem:[#allocation13 + $0x38] sm:$0xff]
    %v968 = vld [vmem:[#allocation13 + $0x40] sm:$0xff]
    %v969 = vld [vmem:[#allocation13 + $0x48] sm:$0xff]
    %v970 = vld [vmem:[#allocation13 + $0x50] sm:$0xff]
    %v971 = vld [vmem:[#allocation13 + $0x58] sm:$0xff]
    %v972 = vld [vmem:[#allocation13 + $0x60] sm:$0xff]
    %v973 = vld [vmem:[#allocation13 + $0x68] sm:$0xff]
    %v974 = vld [vmem:[#allocation13 + $0x70] sm:$0xff]
    %v975 = vld [vmem:[#allocation13 + $0x78] sm:$0xff]
    %v976 = vld [vmem:[%s11] sm:$0x1]
    %v978 = vlaneseq
    %v979 = vshrl.u32 %v978, 7
    %v980 = vsub.s32 0, %v979
    %v981 = vrot.slane %v959, %v980
    %983 = vmatprep.subr.mxu0 0.0
    %984 = vmatpush1.msra.mxu0 %v943
    %985 = vmatprep.subr.mxu0 0.0
    %986 = vmatpush1.msra.mxu0 %v944
    %987 = vmatprep.subr.mxu0 0.0
    %988 = vmatpush1.msra.mxu0 %v945
    %989 = vmatprep.subr.mxu0 0.0
    %990 = vmatpush1.msra.mxu0 %v946
    %991 = vmatprep.subr.mxu0 0.0
    %992 = vmatpush1.msra.mxu0 %v947
    %993 = vmatprep.subr.mxu0 0.0
    %994 = vmatpush1.msra.mxu0 %v948
    %995 = vmatprep.subr.mxu0 0.0
    %996 = vmatpush1.msra.mxu0 %v949
    %997 = vmatprep.subr.mxu0 0.0
    %998 = vmatpush1.msra.mxu0 %v950
    %999 = vmatprep.subr.mxu0 0.0
    %1000 = vmatpush1.msra.mxu0 %v951
    %1001 = vmatprep.subr.mxu0 0.0
    %1002 = vmatpush1.msra.mxu0 %v952
    %1003 = vmatprep.subr.mxu0 0.0
    %1004 = vmatpush1.msra.mxu0 %v953
    %1005 = vmatprep.subr.mxu0 0.0
    %1006 = vmatpush1.msra.mxu0 %v954
    %1007 = vmatprep.subr.mxu0 0.0
    %1008 = vmatpush1.msra.mxu0 %v955
    %1009 = vmatprep.subr.mxu0 0.0
    %1010 = vmatpush1.msra.mxu0 %v956
    %1011 = vmatprep.subr.mxu0 0.0
    %1012 = vmatpush1.msra.mxu0 %v957
    %1013 = vmatprep.subr.mxu0 0.0
    %1014 = vmatpush1.msra.mxu0 %v958
    %1015 = vmatprep.subr.mxu0 0.0
    %1016 = vmatpush1.msra.mxu0 0.0
    %1017 = vmatprep.subr.mxu0 0.0
    %1018 = vmatpush1.msra.mxu0 0.0
    %1019 = vmatprep.subr.mxu0 0.0
    %1020 = vmatpush1.msra.mxu0 0.0
    %1021 = vmatprep.subr.mxu0 0.0
    %1022 = vmatpush1.msra.mxu0 0.0
    %1023 = vmatprep.subr.mxu0 0.0
    %1024 = vmatpush1.msra.mxu0 0.0
    %1025 = vmatprep.subr.mxu0 0.0
    %1026 = vmatpush1.msra.mxu0 0.0
    %1027 = vmatprep.subr.mxu0 0.0
    %1028 = vmatpush1.msra.mxu0 0.0
    %1029 = vmatprep.subr.mxu0 0.0
    %1030 = vmatpush1.msra.mxu0 0.0
    %1031 = vmatprep.subr.mxu0 0.0
    %1032 = vmatpush1.msra.mxu0 0.0
    %1033 = vmatprep.subr.mxu0 0.0
    %1034 = vmatpush1.msra.mxu0 0.0
    %1035 = vmatprep.subr.mxu0 0.0
    %1036 = vmatpush1.msra.mxu0 0.0
    %1037 = vmatprep.subr.mxu0 0.0
    %1038 = vmatpush1.msra.mxu0 0.0
    %1039 = vmatprep.subr.mxu0 0.0
    %1040 = vmatpush1.msra.mxu0 0.0
    %1041 = vmatprep.subr.mxu0 0.0
    %1042 = vmatpush1.msra.mxu0 0.0
    %1043 = vmatprep.subr.mxu0 0.0
    %1044 = vmatpush1.msra.mxu0 0.0
    %1045 = vmatprep.subr.mxu0 0.0
    %1046 = vmatpush1.msra.mxu0 0.0
    %1047 = vmatprep.mubr.f32.mxu0 0.0
    %1048 = vmatmul.mubr.f32.gmra.mrb[0].mxu0 %v940
    %v1049 = vpop.f32.mrb[0].mxu0
    %v1050 = vadd.f32 %v981, %v1049
    %v1051 = vpop.f32.mrb[0].mxu0
    %1052 = vdwg.mxu0
    %v1053 = vld [vmem:[%s3] sm:$0xff]
    %v1054 = vadd.f32 %v1050, %v1053
    %v1055 = vmul.f32 %v1054, 2.0
    %v1056 = vlaneseq
    %v1057 = vand.u32 %v1056, 127
    %vm1058 = vcmp.lt.s32.totalorder %v1057, 4
    %v1059 = vsel %vm1058, %v1055, -1e+30
    %1060 = vmax.xlane.f32.xlu0 %v1059
    %v1061 = vpop.xlane.xlu0 %1060
    %v1062 = vsub.f32 %v1059, %v1061
    %v1063 = vmul.f32 %v1062, 1.442695
    %v1064 = vpow.pop %v1063
    %1065 = vadd.xlane.f32.xlu0 %v1064
    %v1066 = vpop.xlane.xlu0 %1065
    %v1067 = vrcp.pop %v1066
    %v1068 = vmul.f32 %v1064, %v1067
    %v1070 = vlaneseq
    %v1071 = vshrl.u32 %v1070, 7
    %v1072 = vsub.s32 0, %v1071
    %v1073 = vrot.slane %v976, %v1072
    %1075 = vmatprep.subr.mxu0 0.0
    %1076 = vmatpush1.msra.mxu0 %v960
    %1077 = vmatprep.subr.mxu0 0.0
    %1078 = vmatpush1.msra.mxu0 %v961
    %1079 = vmatprep.subr.mxu0 0.0
    %1080 = vmatpush1.msra.mxu0 %v962
    %1081 = vmatprep.subr.mxu0 0.0
    %1082 = vmatpush1.msra.mxu0 %v963
    %1083 = vmatprep.subr.mxu0 0.0
    %1084 = vmatpush1.msra.mxu0 %v964
    %1085 = vmatprep.subr.mxu0 0.0
    %1086 = vmatpush1.msra.mxu0 %v965
    %1087 = vmatprep.subr.mxu0 0.0
    %1088 = vmatpush1.msra.mxu0 %v966
    %1089 = vmatprep.subr.mxu0 0.0
    %1090 = vmatpush1.msra.mxu0 %v967
    %1091 = vmatprep.subr.mxu0 0.0
    %1092 = vmatpush1.msra.mxu0 %v968
    %1093 = vmatprep.subr.mxu0 0.0
    %1094 = vmatpush1.msra.mxu0 %v969
    %1095 = vmatprep.subr.mxu0 0.0
    %1096 = vmatpush1.msra.mxu0 %v970
    %1097 = vmatprep.subr.mxu0 0.0
    %1098 = vmatpush1.msra.mxu0 %v971
    %1099 = vmatprep.subr.mxu0 0.0
    %1100 = vmatpush1.msra.mxu0 %v972
    %1101 = vmatprep.subr.mxu0 0.0
    %1102 = vmatpush1.msra.mxu0 %v973
    %1103 = vmatprep.subr.mxu0 0.0
    %1104 = vmatpush1.msra.mxu0 %v974
    %1105 = vmatprep.subr.mxu0 0.0
    %1106 = vmatpush1.msra.mxu0 %v975
    %1107 = vmatprep.subr.mxu0 0.0
    %1108 = vmatpush1.msra.mxu0 0.0
    %1109 = vmatprep.subr.mxu0 0.0
    %1110 = vmatpush1.msra.mxu0 0.0
    %1111 = vmatprep.subr.mxu0 0.0
    %1112 = vmatpush1.msra.mxu0 0.0
    %1113 = vmatprep.subr.mxu0 0.0
    %1114 = vmatpush1.msra.mxu0 0.0
    %1115 = vmatprep.subr.mxu0 0.0
    %1116 = vmatpush1.msra.mxu0 0.0
    %1117 = vmatprep.subr.mxu0 0.0
    %1118 = vmatpush1.msra.mxu0 0.0
    %1119 = vmatprep.subr.mxu0 0.0
    %1120 = vmatpush1.msra.mxu0 0.0
    %1121 = vmatprep.subr.mxu0 0.0
    %1122 = vmatpush1.msra.mxu0 0.0
    %1123 = vmatprep.subr.mxu0 0.0
    %1124 = vmatpush1.msra.mxu0 0.0
    %1125 = vmatprep.subr.mxu0 0.0
    %1126 = vmatpush1.msra.mxu0 0.0
    %1127 = vmatprep.subr.mxu0 0.0
    %1128 = vmatpush1.msra.mxu0 0.0
    %1129 = vmatprep.subr.mxu0 0.0
    %1130 = vmatpush1.msra.mxu0 0.0
    %1131 = vmatprep.subr.mxu0 0.0
    %1132 = vmatpush1.msra.mxu0 0.0
    %1133 = vmatprep.subr.mxu0 0.0
    %1134 = vmatpush1.msra.mxu0 0.0
    %1135 = vmatprep.subr.mxu0 0.0
    %1136 = vmatpush1.msra.mxu0 0.0
    %1137 = vmatprep.subr.mxu0 0.0
    %1138 = vmatpush1.msra.mxu0 0.0
    %1139 = vmatprep.mubr.f32.mxu0 0.0
    %1140 = vmatmul.mubr.f32.gmra.mrb[0].mxu0 %v1068
    %v1141 = vpop.f32.mrb[0].mxu0
    %v1142 = vadd.f32 %v1073, %v1141
    %v1143 = vpop.f32.mrb[0].mxu0
    %1144 = vdwg.mxu0
    %v1145 = vmax.f32 %v1142, 0.0
    %v1146 = vld [vmem:[#allocation14] sm:$0xff]
    %v1147 = vld [vmem:[#allocation14 + $0x8] sm:$0xff]
    %v1148 = vld [vmem:[#allocation14 + $0x10] sm:$0xff]
    %v1149 = vld [vmem:[#allocation14 + $0x18] sm:$0xff]
    %v1150 = vld [vmem:[#allocation14 + $0x20] sm:$0xff]
    %v1151 = vld [vmem:[#allocation14 + $0x28] sm:$0xff]
    %v1152 = vld [vmem:[#allocation14 + $0x30] sm:$0xff]
    %v1153 = vld [vmem:[#allocation14 + $0x38] sm:$0xff]
    %v1154 = vld [vmem:[#allocation14 + $0x40] sm:$0xff]
    %v1155 = vld [vmem:[#allocation14 + $0x48] sm:$0xff]
    %v1156 = vld [vmem:[#allocation14 + $0x50] sm:$0xff]
    %v1157 = vld [vmem:[#allocation14 + $0x58] sm:$0xff]
    %v1158 = vld [vmem:[#allocation14 + $0x60] sm:$0xff]
    %v1159 = vld [vmem:[#allocation14 + $0x68] sm:$0xff]
    %v1160 = vld [vmem:[#allocation14 + $0x70] sm:$0xff]
    %v1161 = vld [vmem:[#allocation14 + $0x78] sm:$0xff]
    %v1162 = vld [vmem:[%s13] sm:$0x1]
    %v1164 = vlaneseq
    %v1165 = vshrl.u32 %v1164, 7
    %v1166 = vsub.s32 0, %v1165
    %v1167 = vrot.slane %v1162, %v1166
    %1169 = vmatprep.subr.mxu0 0.0
    %1170 = vmatpush1.msra.mxu0 %v1146
    %1171 = vmatprep.subr.mxu0 0.0
    %1172 = vmatpush1.msra.mxu0 %v1147
    %1173 = vmatprep.subr.mxu0 0.0
    %1174 = vmatpush1.msra.mxu0 %v1148
    %1175 = vmatprep.subr.mxu0 0.0
    %1176 = vmatpush1.msra.mxu0 %v1149
    %1177 = vmatprep.subr.mxu0 0.0
    %1178 = vmatpush1.msra.mxu0 %v1150
    %1179 = vmatprep.subr.mxu0 0.0
    %1180 = vmatpush1.msra.mxu0 %v1151
    %1181 = vmatprep.subr.mxu0 0.0
    %1182 = vmatpush1.msra.mxu0 %v1152
    %1183 = vmatprep.subr.mxu0 0.0
    %1184 = vmatpush1.msra.mxu0 %v1153
    %1185 = vmatprep.subr.mxu0 0.0
    %1186 = vmatpush1.msra.mxu0 %v1154
    %1187 = vmatprep.subr.mxu0 0.0
    %1188 = vmatpush1.msra.mxu0 %v1155
    %1189 = vmatprep.subr.mxu0 0.0
    %1190 = vmatpush1.msra.mxu0 %v1156
    %1191 = vmatprep.subr.mxu0 0.0
    %1192 = vmatpush1.msra.mxu0 %v1157
    %1193 = vmatprep.subr.mxu0 0.0
    %1194 = vmatpush1.msra.mxu0 %v1158
    %1195 = vmatprep.subr.mxu0 0.0
    %1196 = vmatpush1.msra.mxu0 %v1159
    %1197 = vmatprep.subr.mxu0 0.0
    %1198 = vmatpush1.msra.mxu0 %v1160
    %1199 = vmatprep.subr.mxu0 0.0
    %1200 = vmatpush1.msra.mxu0 %v1161
    %1201 = vmatprep.subr.mxu0 0.0
    %1202 = vmatpush1.msra.mxu0 0.0
    %1203 = vmatprep.subr.mxu0 0.0
    %1204 = vmatpush1.msra.mxu0 0.0
    %1205 = vmatprep.subr.mxu0 0.0
    %1206 = vmatpush1.msra.mxu0 0.0
    %1207 = vmatprep.subr.mxu0 0.0
    %1208 = vmatpush1.msra.mxu0 0.0
    %1209 = vmatprep.subr.mxu0 0.0
    %1210 = vmatpush1.msra.mxu0 0.0
    %1211 = vmatprep.subr.mxu0 0.0
    %1212 = vmatpush1.msra.mxu0 0.0
    %1213 = vmatprep.subr.mxu0 0.0
    %1214 = vmatpush1.msra.mxu0 0.0
    %1215 = vmatprep.subr.mxu0 0.0
    %1216 = vmatpush1.msra.mxu0 0.0
    %1217 = vmatprep.subr.mxu0 0.0
    %1218 = vmatpush1.msra.mxu0 0.0
    %1219 = vmatprep.subr.mxu0 0.0
    %1220 = vmatpush1.msra.mxu0 0.0
    %1221 = vmatprep.subr.mxu0 0.0
    %1222 = vmatpush1.msra.mxu0 0.0
    %1223 = vmatprep.subr.mxu0 0.0
    %1224 = vmatpush1.msra.mxu0 0.0
    %1225 = vmatprep.subr.mxu0 0.0
    %1226 = vmatpush1.msra.mxu0 0.0
    %1227 = vmatprep.subr.mxu0 0.0
    %1228 = vmatpush1.msra.mxu0 0.0
    %1229 = vmatprep.subr.mxu0 0.0
    %1230 = vmatpush1.msra.mxu0 0.0
    %1231 = vmatprep.subr.mxu0 0.0
    %1232 = vmatpush1.msra.mxu0 0.0
    %1233 = vmatprep.mubr.f32.mxu0 0.0
    %1234 = vmatmul.mubr.f32.gmra.mrb[0].mxu0 %v1145
    %v1235 = vpop.f32.mrb[0].mxu0
    %v1236 = vadd.f32 %v1167, %v1235
    %v1237 = vpop.f32.mrb[0].mxu0
    %1238 = vdwg.mxu0
    %v1239 = vmax.f32 %v1236, 0.0
    %v1240 = vld [vmem:[#allocation16] sm:$0xff]
    %v1241 = vld [vmem:[#allocation16 + $0x8] sm:$0xff]
    %v1242 = vld [vmem:[#allocation16 + $0x10] sm:$0xff]
    %v1243 = vld [vmem:[#allocation16 + $0x18] sm:$0xff]
    %v1244 = vld [vmem:[#allocation16 + $0x20] sm:$0xff]
    %v1245 = vld [vmem:[#allocation16 + $0x28] sm:$0xff]
    %v1246 = vld [vmem:[#allocation16 + $0x30] sm:$0xff]
    %v1247 = vld [vmem:[#allocation16 + $0x38] sm:$0xff]
    %v1248 = vld [vmem:[#allocation16 + $0x40] sm:$0xff]
    %v1249 = vld [vmem:[#allocation16 + $0x48] sm:$0xff]
    %v1250 = vld [vmem:[#allocation16 + $0x50] sm:$0xff]
    %v1251 = vld [vmem:[#allocation16 + $0x58] sm:$0xff]
    %v1252 = vld [vmem:[#allocation16 + $0x60] sm:$0xff]
    %v1253 = vld [vmem:[#allocation16 + $0x68] sm:$0xff]
    %v1254 = vld [vmem:[#allocation16 + $0x70] sm:$0xff]
    %v1255 = vld [vmem:[#allocation16 + $0x78] sm:$0xff]
    %v1256 = vld [vmem:[%s15] sm:$0x1]
    %v1258 = vlaneseq
    %v1259 = vshrl.u32 %v1258, 7
    %v1260 = vsub.s32 0, %v1259
    %v1261 = vrot.slane %v1256, %v1260
    %1263 = vmatprep.subr.mxu0 0.0
    %1264 = vmatpush1.msra.mxu0 %v1240
    %1265 = vmatprep.subr.mxu0 0.0
    %1266 = vmatpush1.msra.mxu0 %v1241
    %1267 = vmatprep.subr.mxu0 0.0
    %1268 = vmatpush1.msra.mxu0 %v1242
    %1269 = vmatprep.subr.mxu0 0.0
    %1270 = vmatpush1.msra.mxu0 %v1243
    %1271 = vmatprep.subr.mxu0 0.0
    %1272 = vmatpush1.msra.mxu0 %v1244
    %1273 = vmatprep.subr.mxu0 0.0
    %1274 = vmatpush1.msra.mxu0 %v1245
    %1275 = vmatprep.subr.mxu0 0.0
    %1276 = vmatpush1.msra.mxu0 %v1246
    %1277 = vmatprep.subr.mxu0 0.0
    %1278 = vmatpush1.msra.mxu0 %v1247
    %1279 = vmatprep.subr.mxu0 0.0
    %1280 = vmatpush1.msra.mxu0 %v1248
    %1281 = vmatprep.subr.mxu0 0.0
    %1282 = vmatpush1.msra.mxu0 %v1249
    %1283 = vmatprep.subr.mxu0 0.0
    %1284 = vmatpush1.msra.mxu0 %v1250
    %1285 = vmatprep.subr.mxu0 0.0
    %1286 = vmatpush1.msra.mxu0 %v1251
    %1287 = vmatprep.subr.mxu0 0.0
    %1288 = vmatpush1.msra.mxu0 %v1252
    %1289 = vmatprep.subr.mxu0 0.0
    %1290 = vmatpush1.msra.mxu0 %v1253
    %1291 = vmatprep.subr.mxu0 0.0
    %1292 = vmatpush1.msra.mxu0 %v1254
    %1293 = vmatprep.subr.mxu0 0.0
    %1294 = vmatpush1.msra.mxu0 %v1255
    %1295 = vmatprep.subr.mxu0 0.0
    %1296 = vmatpush1.msra.mxu0 0.0
    %1297 = vmatprep.subr.mxu0 0.0
    %1298 = vmatpush1.msra.mxu0 0.0
    %1299 = vmatprep.subr.mxu0 0.0
    %1300 = vmatpush1.msra.mxu0 0.0
    %1301 = vmatprep.subr.mxu0 0.0
    %1302 = vmatpush1.msra.mxu0 0.0
    %1303 = vmatprep.subr.mxu0 0.0
    %1304 = vmatpush1.msra.mxu0 0.0
    %1305 = vmatprep.subr.mxu0 0.0
    %1306 = vmatpush1.msra.mxu0 0.0
    %1307 = vmatprep.subr.mxu0 0.0
    %1308 = vmatpush1.msra.mxu0 0.0
    %1309 = vmatprep.subr.mxu0 0.0
    %1310 = vmatpush1.msra.mxu0 0.0
    %1311 = vmatprep.subr.mxu0 0.0
    %1312 = vmatpush1.msra.mxu0 0.0
    %1313 = vmatprep.subr.mxu0 0.0
    %1314 = vmatpush1.msra.mxu0 0.0
    %1315 = vmatprep.subr.mxu0 0.0
    %1316 = vmatpush1.msra.mxu0 0.0
    %1317 = vmatprep.subr.mxu0 0.0
    %1318 = vmatpush1.msra.mxu0 0.0
    %1319 = vmatprep.subr.mxu0 0.0
    %1320 = vmatpush1.msra.mxu0 0.0
    %1321 = vmatprep.subr.mxu0 0.0
    %1322 = vmatpush1.msra.mxu0 0.0
    %1323 = vmatprep.subr.mxu0 0.0
    %1324 = vmatpush1.msra.mxu0 0.0
    %1325 = vmatprep.subr.mxu0 0.0
    %1326 = vmatpush1.msra.mxu0 0.0
    %1327 = vmatprep.mubr.f32.mxu0 0.0
    %1328 = vmatmul.mubr.f32.gmra.mrb[0].mxu0 %v1239
    %v1329 = vpop.f32.mrb[0].mxu0
    %v1330 = vadd.f32 %v1261, %v1329
    %v1331 = vpop.f32.mrb[0].mxu0
    %1332 = vdwg.mxu0
    %v1333 = vmax.f32 %v1330, 0.0
    %v1334 = vld [vmem:[#allocation17] sm:$0xff]
    %v1335 = vld [vmem:[#allocation17 + $0x8] sm:$0xff]
    %v1336 = vld [vmem:[#allocation17 + $0x10] sm:$0xff]
    %v1337 = vld [vmem:[#allocation17 + $0x18] sm:$0xff]
    %v1338 = vld [vmem:[#allocation17 + $0x20] sm:$0xff]
    %v1339 = vld [vmem:[#allocation17 + $0x28] sm:$0xff]
    %v1340 = vld [vmem:[#allocation17 + $0x30] sm:$0xff]
    %v1341 = vld [vmem:[#allocation17 + $0x38] sm:$0xff]
    %v1342 = vld [vmem:[#allocation17 + $0x40] sm:$0xff]
    %v1343 = vld [vmem:[#allocation17 + $0x48] sm:$0xff]
    %v1344 = vld [vmem:[#allocation17 + $0x50] sm:$0xff]
    %v1345 = vld [vmem:[#allocation17 + $0x58] sm:$0xff]
    %v1346 = vld [vmem:[#allocation17 + $0x60] sm:$0xff]
    %v1347 = vld [vmem:[#allocation17 + $0x68] sm:$0xff]
    %v1348 = vld [vmem:[#allocation17 + $0x70] sm:$0xff]
    %v1349 = vld [vmem:[#allocation17 + $0x78] sm:$0xff]
    %v1350 = vld [vmem:[%s17] sm:$0x1]
    %v1352 = vlaneseq
    %v1353 = vshrl.u32 %v1352, 7
    %v1354 = vsub.s32 0, %v1353
    %v1355 = vrot.slane %v1350, %v1354
    %1357 = vmatprep.subr.mxu0 0.0
    %1358 = vmatpush1.msra.mxu0 %v1334
    %1359 = vmatprep.subr.mxu0 0.0
    %1360 = vmatpush1.msra.mxu0 %v1335
    %1361 = vmatprep.subr.mxu0 0.0
    %1362 = vmatpush1.msra.mxu0 %v1336
    %1363 = vmatprep.subr.mxu0 0.0
    %1364 = vmatpush1.msra.mxu0 %v1337
    %1365 = vmatprep.subr.mxu0 0.0
    %1366 = vmatpush1.msra.mxu0 %v1338
    %1367 = vmatprep.subr.mxu0 0.0
    %1368 = vmatpush1.msra.mxu0 %v1339
    %1369 = vmatprep.subr.mxu0 0.0
    %1370 = vmatpush1.msra.mxu0 %v1340
    %1371 = vmatprep.subr.mxu0 0.0
    %1372 = vmatpush1.msra.mxu0 %v1341
    %1373 = vmatprep.subr.mxu0 0.0
    %1374 = vmatpush1.msra.mxu0 %v1342
    %1375 = vmatprep.subr.mxu0 0.0
    %1376 = vmatpush1.msra.mxu0 %v1343
    %1377 = vmatprep.subr.mxu0 0.0
    %1378 = vmatpush1.msra.mxu0 %v1344
    %1379 = vmatprep.subr.mxu0 0.0
    %1380 = vmatpush1.msra.mxu0 %v1345
    %1381 = vmatprep.subr.mxu0 0.0
    %1382 = vmatpush1.msra.mxu0 %v1346
    %1383 = vmatprep.subr.mxu0 0.0
    %1384 = vmatpush1.msra.mxu0 %v1347
    %1385 = vmatprep.subr.mxu0 0.0
    %1386 = vmatpush1.msra.mxu0 %v1348
    %1387 = vmatprep.subr.mxu0 0.0
    %1388 = vmatpush1.msra.mxu0 %v1349
    %1389 = vmatprep.subr.mxu0 0.0
    %1390 = vmatpush1.msra.mxu0 0.0
    %1391 = vmatprep.subr.mxu0 0.0
    %1392 = vmatpush1.msra.mxu0 0.0
    %1393 = vmatprep.subr.mxu0 0.0
    %1394 = vmatpush1.msra.mxu0 0.0
    %1395 = vmatprep.subr.mxu0 0.0
    %1396 = vmatpush1.msra.mxu0 0.0
    %1397 = vmatprep.subr.mxu0 0.0
    %1398 = vmatpush1.msra.mxu0 0.0
    %1399 = vmatprep.subr.mxu0 0.0
    %1400 = vmatpush1.msra.mxu0 0.0
    %1401 = vmatprep.subr.mxu0 0.0
    %1402 = vmatpush1.msra.mxu0 0.0
    %1403 = vmatprep.subr.mxu0 0.0
    %1404 = vmatpush1.msra.mxu0 0.0
    %1405 = vmatprep.subr.mxu0 0.0
    %1406 = vmatpush1.msra.mxu0 0.0
    %1407 = vmatprep.subr.mxu0 0.0
    %1408 = vmatpush1.msra.mxu0 0.0
    %1409 = vmatprep.subr.mxu0 0.0
    %1410 = vmatpush1.msra.mxu0 0.0
    %1411 = vmatprep.subr.mxu0 0.0
    %1412 = vmatpush1.msra.mxu0 0.0
    %1413 = vmatprep.subr.mxu0 0.0
    %1414 = vmatpush1.msra.mxu0 0.0
    %1415 = vmatprep.subr.mxu0 0.0
    %1416 = vmatpush1.msra.mxu0 0.0
    %1417 = vmatprep.subr.mxu0 0.0
    %1418 = vmatpush1.msra.mxu0 0.0
    %1419 = vmatprep.subr.mxu0 0.0
    %1420 = vmatpush1.msra.mxu0 0.0
    %1421 = vmatprep.mubr.f32.mxu0 0.0
    %1422 = vmatmul.mubr.f32.gmra.mrb[0].mxu0 %v1333
    %v1423 = vpop.f32.mrb[0].mxu0
    %v1424 = vadd.f32 %v1355, %v1423
    %v1425 = vpop.f32.mrb[0].mxu0
    %1426 = vdwg.mxu0
    %1427 = vst [vmem:[#allocation19] sm:$0xff] %v1424
    %1428 = vst [vmem:[#allocation20] sm:$0xff] %v1145
    %1429 = vst [vmem:[#allocation22] sm:$0xff] %v1068
    // Predicated region
    $region114: #{tpu_custom_call.1} parent=1 // pred_check
      _
    $region115: #{tpu_custom_call.1} parent=1 // pred_check_branch
      %1431 = sbr.rel (0) target = $region117
    $region116: #{tpu_custom_call.1} parent=1 // pred_region
      %s1433 = ssub.s32 128, 128
      %1434 = vsyncadd [#allocation4], %s1433
      %s1436 = sshll.u32 [#allocation19], 4
      %s1437 = int_to_ptr.vmem [resolvable:$true] %s1436
      %1439 = dma.vmem_to_hbm [thread:$0]  %s1437, 128, %s18, [#allocation4]
    $region117: #{tpu_custom_call.1} parent=1 // pred_fallthru
      _
    // Predicated region
    $region118: #{tpu_custom_call.1} parent=1 // pred_check
      _
    $region119: #{tpu_custom_call.1} parent=1 // pred_check_branch
      %1441 = sbr.rel (0) target = $region121
    $region120: #{tpu_custom_call.1} parent=1 // pred_region
      %s1443 = ssub.s32 128, 128
      %1444 = vsyncadd [#allocation21], %s1443
      %s1446 = sshll.u32 [#allocation20], 4
      %s1447 = int_to_ptr.vmem [resolvable:$true] %s1446
      %1449 = dma.vmem_to_hbm [thread:$0]  %s1447, 128, %s19, [#allocation21]
    $region121: #{tpu_custom_call.1} parent=1 // pred_fallthru
      _
    // Predicated region
    $region122: #{tpu_custom_call.1} parent=1 // pred_check
      _
    $region123: #{tpu_custom_call.1} parent=1 // pred_check_branch
      %1451 = sbr.rel (0) target = $region125
    $region124: #{tpu_custom_call.1} parent=1 // pred_region
      %s1453 = ssub.s32 128, 128
      %1454 = vsyncadd [#allocation21], %s1453
      %s1456 = sshll.u32 [#allocation22], 4
      %s1457 = int_to_ptr.vmem [resolvable:$true] %s1456
      %1459 = dma.vmem_to_hbm [thread:$0]  %s1457, 128, %s20, [#allocation21]
    $region125: #{tpu_custom_call.1} parent=1 // pred_fallthru
      _
    // Predicated region
    $region126: #{tpu_custom_call.1} parent=1 // pred_check
      _
    $region127: #{tpu_custom_call.1} parent=1 // pred_check_branch
      %1461 = sbr.rel (0) target = $region129
    $region128: #{tpu_custom_call.1} parent=1 // pred_region
      %1462 = dma.done [#allocation4], 128
    $region129: #{tpu_custom_call.1} parent=1 // pred_fallthru
      _
    // Predicated region
    $region130: #{tpu_custom_call.1} parent=1 // pred_check
      _
    $region131: #{tpu_custom_call.1} parent=1 // pred_check_branch
      %1464 = sbr.rel (0) target = $region133
    $region132: #{tpu_custom_call.1} parent=1 // pred_region
      %1465 = dma.done [#allocation21], 128
    $region133: #{tpu_custom_call.1} parent=1 // pred_fallthru
      _
    // Predicated region
    $region134: #{tpu_custom_call.1} parent=1 // pred_check
      _
    $region135: #{tpu_custom_call.1} parent=1 // pred_check_branch
      %1467 = sbr.rel (0) target = $region137
    $region136: #{tpu_custom_call.1} parent=1 // pred_region
      %1468 = dma.done [#allocation21], 128
    $region137: #{tpu_custom_call.1} parent=1 // pred_fallthru
      _
    %1469 = vsyncpa [#allocation3], 1
    %1470 = vsyncpa [#allocation6], 1
    %1471 = vsyncpa [#allocation9], 1
    %1472 = vsyncpa [#allocation12], 1
    %1473 = vsyncpa [#allocation15], 1
    %1474 = vsyncpa [#allocation18], 1
    %1475 = vsyncpa [#allocation4], 1
    %1476 = vsyncpa [#allocation21], 1

</llo_original>
